<compile_context>
chip_gen: v6e
topology: v6e:2x2x1
jax: 0.10.0
libtpu: 0.0.40
codegen_flags: <defaults>
</compile_context>

<pallas_src>
import functools

import jax
import jax.numpy as jnp
from jax import lax
from jax.experimental import pallas as pl
from jax.experimental.pallas import tpu as pltpu

EPS = 1e-5
NEG_BIG = -1e30


def _layernorm(x, gamma, beta):
    mu = jnp.mean(x, axis=-1, keepdims=True)
    var = jnp.mean((x - mu) ** 2, axis=-1, keepdims=True)
    return (x - mu) * lax.rsqrt(var + EPS) * gamma + beta


def encoder_layer_kernel(src_ref, mask_ref, adj_off_ref, adj_diag_ref,
                         wqkv_ref, bqkv_ref, wo_ref, wg_ref, vec_ref,
                         out_ref, *, num_heads, dk):
    x = src_ref[0]                           # (N, D) = (batch_block*S, D), float32
    N, D = x.shape
    H = num_heads
    inv_scale = 1.0 / (float(dk) ** 0.5)

    # ---- Fused QKV projection: one (N, D) x (D, 3*H*dk) MXU push ----
    qkv = jnp.dot(x, wqkv_ref[...], preferred_element_type=jnp.float32) + bqkv_ref[...]
    q_all = qkv[:, 0 * H * dk:1 * H * dk]
    k_all = qkv[:, 1 * H * dk:2 * H * dk]
    v_all = qkv[:, 2 * H * dk:3 * H * dk]

    # Block-diagonal mask (0 within a batch element, -1e30 across) lets the whole
    # batch block share one score/softmax without cross-batch leakage.
    mask = mask_ref[...]                     # (N, N)

    heads = []
    for h in range(H):                       # H small & static -> unrolled
        q = q_all[:, h * dk:(h + 1) * dk]
        k = k_all[:, h * dk:(h + 1) * dk]
        v = v_all[:, h * dk:(h + 1) * dk]
        s = jnp.dot(q, k.T, preferred_element_type=jnp.float32) * inv_scale + mask
        s = s - jnp.max(s, axis=-1, keepdims=True)
        p = jnp.exp(s)
        p = p * pl.reciprocal(jnp.sum(p, axis=-1, keepdims=True), approx=True)
        heads.append(jnp.dot(p, v, preferred_element_type=jnp.float32))   # (N, dk)
    concat = jnp.concatenate(heads, axis=-1)                              # (N, H*dk)

    bo = vec_ref[0:1, :]
    g1 = vec_ref[1:2, :]
    b1 = vec_ref[2:3, :]
    bg = vec_ref[3:4, :]
    g2 = vec_ref[4:5, :]
    b2 = vec_ref[5:6, :]

    # ---- Fused output projection + residual + LayerNorm #1 ----
    attn = jnp.dot(concat, wo_ref[...], preferred_element_type=jnp.float32) + bo
    y = _layernorm(x + attn, g1, b1)

    # ---- SemGraphConv-style graph convolution ----
    # adj softmax precomputed in the wrapper; diagonal term is a broadcast-multiply,
    # off-diagonal term is one block-diagonal matmul; Wg0|Wg1 fused into (D, 2D).
    h01 = jnp.dot(y, wg_ref[...], preferred_element_type=jnp.float32)    # (N, 2D)
    h0 = h01[:, :D]
    h1 = h01[:, D:]
    g = (adj_diag_ref[...] * h0
         + jnp.dot(adj_off_ref[...], h1, preferred_element_type=jnp.float32)
         + bg)

    # ---- Residual + LayerNorm #2 ----
    out_ref[0] = _layernorm(y + g, g2, b2).astype(out_ref.dtype)


def encoder_layer_pallas(src, adj, params, *, num_steps=None):
    B, S, D = src.shape
    H, _, dk = params["Wq"].shape
    f32 = jnp.float32

    if num_steps is None:
        try:
            kind = jax.devices()[0].device_kind.lower()
        except Exception:
            kind = ""
        # v7x has 2 TensorCores/chip: keep a >=2-way parallel grid there; otherwise
        # collapse to a single grid step (single-TC v5e/v6e).
        num_steps = 2 if ("v7" in kind and B >= 2 and B % 2 == 0) else 1
    assert B % num_steps == 0, "batch must divide the number of grid steps"
    BB = B // num_steps
    N = BB * S

    # ---- batch-invariant precompute (one-time XLA work, hoisted out of the kernel) ----
    logits = jnp.where(adj > 0, adj, f32(-9e15))
    adj_sm = jax.nn.softmax(logits, axis=1)                     # (S, S)
    eye_s = jnp.eye(S, dtype=f32)
    adj_off = adj_sm * (1.0 - eye_s)
    adj_diag = jnp.diagonal(adj_sm).reshape(S, 1)

    eye_bb = jnp.eye(BB, dtype=f32)
    adj_off_blk = jnp.kron(eye_bb, adj_off)                     # (N, N) block-diagonal
    adj_diag_blk = jnp.tile(adj_diag, (BB, 1))                  # (N, 1)
    block_sel = jnp.kron(eye_bb, jnp.ones((S, S), f32))
    attn_mask = jnp.where(block_sel > 0, f32(0.0), f32(NEG_BIG))  # (N, N)

    # ---- pack parameters into a few lane-dense slabs ----
    def flat_heads(w):                                          # (H, D, dk) -> (D, H*dk)
        return jnp.transpose(w, (1, 0, 2)).reshape(D, H * dk)

    wqkv = jnp.concatenate([flat_heads(params["Wq"]),
                            flat_heads(params["Wk"]),
                            flat_heads(params["Wv"])], axis=1)              # (D, 3*H*dk)
    bqkv = jnp.concatenate([params["bq"].reshape(1, H * dk),
                            params["bk"].reshape(1, H * dk),
                            params["bv"].reshape(1, H * dk)], axis=1)       # (1, 3*H*dk)
    wo = params["Wo"].reshape(H * dk, D)                                    # (H*dk, D)
    wg = jnp.concatenate([params["Wg0"], params["Wg1"]], axis=1)            # (D, 2D)
    vecs = jnp.concatenate([params["bo"], params["g1"], params["b1"],
                            params["bg"], params["g2"], params["b2"]], axis=0)  # (6, D)

    src_r = src.reshape(num_steps, N, D)

    def inv(shape):  # batch-invariant full-array block
        return pl.BlockSpec(shape, lambda i: (0,) * len(shape))

    kernel = functools.partial(encoder_layer_kernel, num_heads=H, dk=dk)

    out = pl.pallas_call(
        kernel,
        out_shape=jax.ShapeDtypeStruct((num_steps, N, D), f32),
        grid_spec=pltpu.PrefetchScalarGridSpec(
            num_scalar_prefetch=0,
            grid=(num_steps,),
            in_specs=[
                pl.BlockSpec((1, N, D), lambda i: (i, 0, 0)),   # src (per-step block)
                inv((N, N)),                                    # attention block mask
                inv((N, N)),                                    # adj_sm off-diagonal
                inv((N, 1)),                                    # adj_sm diagonal
                inv((D, 3 * H * dk)),                           # fused QKV weight
                inv((1, 3 * H * dk)),                           # fused QKV bias
                inv((H * dk, D)),                               # Wo (flattened)
                inv((D, 2 * D)),                                # Wg0 | Wg1
                inv((6, D)),                                    # bo,g1,b1,bg,g2,b2
            ],
            out_specs=pl.BlockSpec((1, N, D), lambda i: (i, 0, 0)),
        ),
        compiler_params=pltpu.CompilerParams(
            dimension_semantics=("parallel",)),
    )(src_r, attn_mask, adj_off_blk, adj_diag_blk, wqkv, bqkv, wo, wg, vecs)

    return out.reshape(B, S, D)


def encoder_layer_reference(src, adj, params):
    """Pure-JAX reference mirroring the PyTorch forward semantics (unpacked params)."""
    H, D, dk = params["Wq"].shape
    B, S, _ = src.shape
    scale = float(dk) ** 0.5
    heads = []
    for h in range(H):
        q = src @ params["Wq"][h] + params["bq"][h]
        k = src @ params["Wk"][h] + params["bk"][h]
        v = src @ params["Wv"][h] + params["bv"][h]
        s = jnp.einsum("bqd,bkd->bqk", q, k) / scale
        heads.append(jnp.einsum("bqk,bkd->bqd", jax.nn.softmax(s, axis=-1), v))
    concat = jnp.concatenate(heads, axis=-1)                    # (B, S, H*dk)
    wo_flat = params["Wo"].reshape(H * dk, D)
    attn = concat @ wo_flat + params["bo"]
    y = _layernorm(src + attn, params["g1"], params["b1"])

    logits = jnp.where(adj > 0, adj, -9e15)
    adj_sm = jax.nn.softmax(logits, axis=1)
    eye = jnp.eye(S, dtype=jnp.float32)
    h0 = y @ params["Wg0"]
    h1 = y @ params["Wg1"]
    g = (jnp.einsum("ij,bjd->bid", adj_sm * eye, h0)
         + jnp.einsum("ij,bjd->bid", adj_sm * (1.0 - eye), h1)
         + params["bg"])
    return _layernorm(y + g, params["g2"], params["b2"])


def make_params(key, dim_model, num_heads):
    dk = max(dim_model // num_heads, 1)
    ks = jax.random.split(key, 12)
    n = lambda k, shape, s=0.1: (s * jax.random.normal(k, shape)).astype(jnp.float32)
    return {
        "Wq": n(ks[0], (num_heads, dim_model, dk)),
        "bq": n(ks[1], (num_heads, 1, dk)),
        "Wk": n(ks[2], (num_heads, dim_model, dk)),
        "bk": n(ks[3], (num_heads, 1, dk)),
        "Wv": n(ks[4], (num_heads, dim_model, dk)),
        "bv": n(ks[5], (num_heads, 1, dk)),
        "Wo": n(ks[6], (num_heads, dk, dim_model)),
        "bo": n(ks[7], (1, dim_model)),
        "g1": jnp.ones((1, dim_model), jnp.float32),
        "b1": jnp.zeros((1, dim_model), jnp.float32),
        "Wg0": n(ks[8], (dim_model, dim_model)),
        "Wg1": n(ks[9], (dim_model, dim_model)),
        "bg": n(ks[10], (1, dim_model)),
        "g2": jnp.ones((1, dim_model), jnp.float32),
        "b2": jnp.zeros((1, dim_model), jnp.float32),
    }


if __name__ == "__main__":
    B, S, dim_model, num_heads = 2, 8, 48, 6   # dk = 48 // 6 = 8

    key = jax.random.PRNGKey(0)
    k_src, k_adj, k_par = jax.random.split(key, 3)

    src = jax.random.normal(k_src, (B, S, dim_model), dtype=jnp.float32)

    # Deterministic sparse-ish adjacency with self-loops (positive edge weights).
    edge_mask = (jax.random.uniform(k_adj, (S, S)) > 0.5).astype(jnp.float32)
    edge_mask = jnp.maximum(edge_mask, jnp.eye(S, dtype=jnp.float32))
    adj = edge_mask * (0.5 + jax.random.uniform(jax.random.fold_in(k_adj, 1), (S, S)))
    adj = adj.astype(jnp.float32)

    params = make_params(k_par, dim_model, num_heads)

    out = encoder_layer_pallas(src, adj, params)
    out = jax.block_until_ready(out)

    ref = encoder_layer_reference(src, adj, params)
    assert out.shape == (B, S, dim_model)
    max_err = jnp.max(jnp.abs(out - ref))
    assert jnp.allclose(out, ref, atol=2e-3, rtol=2e-3), f"max abs err {max_err}"

    print("KERNEL_OK")
</pallas_src>

<mosaic_0001>
module attributes {stable_mosaic.version = 11 : i64} {
  func.func @encoder_layer_kernel(%arg0: i32, %arg1: memref<1x16x48xf32, #tpu.memory_space<vmem>>, %arg2: memref<16x16xf32, #tpu.memory_space<vmem>>, %arg3: memref<16x16xf32, #tpu.memory_space<vmem>>, %arg4: memref<16x1xf32, #tpu.memory_space<vmem>>, %arg5: memref<48x144xf32, #tpu.memory_space<vmem>>, %arg6: memref<1x144xf32, #tpu.memory_space<vmem>>, %arg7: memref<48x48xf32, #tpu.memory_space<vmem>>, %arg8: memref<48x96xf32, #tpu.memory_space<vmem>>, %arg9: memref<6x48xf32, #tpu.memory_space<vmem>>, %arg10: memref<1x16x48xf32, #tpu.memory_space<vmem>>) attributes {dimension_semantics = [#tpu.dimension_semantics<parallel>], iteration_bounds = array<i64: 1>, scalar_prefetch = 0 : i64, scratch_operands = 0 : i64, tpu.core_type = #tpu.core_type<tc>, window_params = [{transform_indices = @transform_0, window_bounds = array<i64: 1, 16, 48>}, {pipeline_mode = #tpu.pipeline_mode<synchronous>, transform_indices = @transform_1, window_bounds = array<i64: 16, 16>}, {pipeline_mode = #tpu.pipeline_mode<synchronous>, transform_indices = @transform_2, window_bounds = array<i64: 16, 16>}, {pipeline_mode = #tpu.pipeline_mode<synchronous>, transform_indices = @transform_3, window_bounds = array<i64: 16, 1>}, {pipeline_mode = #tpu.pipeline_mode<synchronous>, transform_indices = @transform_4, window_bounds = array<i64: 48, 144>}, {pipeline_mode = #tpu.pipeline_mode<synchronous>, transform_indices = @transform_5, window_bounds = array<i64: 1, 144>}, {pipeline_mode = #tpu.pipeline_mode<synchronous>, transform_indices = @transform_6, window_bounds = array<i64: 48, 48>}, {pipeline_mode = #tpu.pipeline_mode<synchronous>, transform_indices = @transform_7, window_bounds = array<i64: 48, 96>}, {pipeline_mode = #tpu.pipeline_mode<synchronous>, transform_indices = @transform_8, window_bounds = array<i64: 6, 48>}, {transform_indices = @transform_9, window_bounds = array<i64: 1, 16, 48>}]} {
    %c0 = arith.constant 0 : index
    %c0_0 = arith.constant 0 : index
    %c0_1 = arith.constant 0 : index
    %0 = vector.load %arg1[%c0, %c0_0, %c0_1] : memref<1x16x48xf32, #tpu.memory_space<vmem>>, vector<1x16x48xf32>
    %1 = vector.shape_cast %0 : vector<1x16x48xf32> to vector<16x48xf32>
    %c0_2 = arith.constant 0 : index
    %c0_3 = arith.constant 0 : index
    %2 = vector.load %arg5[%c0_2, %c0_3] : memref<48x144xf32, #tpu.memory_space<vmem>>, vector<48x144xf32>
    %cst = arith.constant dense<0.000000e+00> : vector<16x144xf32>
    %3 = tpu.matmul %1, %2, %cst {dimension_numbers = #tpu.dot_dimension_numbers<[1], [0], [0], [1], [0, 0, 1, 1], [], []>} : vector<16x48xf32>, vector<48x144xf32>, vector<16x144xf32> -> vector<16x144xf32>
    %c0_4 = arith.constant 0 : index
    %c0_5 = arith.constant 0 : index
    %4 = vector.load %arg6[%c0_4, %c0_5] : memref<1x144xf32, #tpu.memory_space<vmem>>, vector<1x144xf32>
    %5 = vector.broadcast %4 : vector<1x144xf32> to vector<16x144xf32>
    %6 = arith.addf %3, %5 : vector<16x144xf32>
    %7 = vector.extract_strided_slice %6 {offsets = [0, 0], sizes = [16, 48], strides = [1, 1]} : vector<16x144xf32> to vector<16x48xf32>
    %8 = vector.extract_strided_slice %6 {offsets = [0, 48], sizes = [16, 48], strides = [1, 1]} : vector<16x144xf32> to vector<16x48xf32>
    %9 = vector.extract_strided_slice %6 {offsets = [0, 96], sizes = [16, 48], strides = [1, 1]} : vector<16x144xf32> to vector<16x48xf32>
    %c0_6 = arith.constant 0 : index
    %c0_7 = arith.constant 0 : index
    %10 = vector.load %arg2[%c0_6, %c0_7] : memref<16x16xf32, #tpu.memory_space<vmem>>, vector<16x16xf32>
    %11 = vector.extract_strided_slice %7 {offsets = [0, 0], sizes = [16, 8], strides = [1, 1]} : vector<16x48xf32> to vector<16x8xf32>
    %12 = vector.extract_strided_slice %8 {offsets = [0, 0], sizes = [16, 8], strides = [1, 1]} : vector<16x48xf32> to vector<16x8xf32>
    %13 = vector.extract_strided_slice %9 {offsets = [0, 0], sizes = [16, 8], strides = [1, 1]} : vector<16x48xf32> to vector<16x8xf32>
    %14 = tpu.transpose %12, [1, 0] : vector<16x8xf32> -> vector<8x16xf32>
    %cst_8 = arith.constant dense<0.000000e+00> : vector<16x16xf32>
    %15 = tpu.matmul %11, %14, %cst_8 {dimension_numbers = #tpu.dot_dimension_numbers<[1], [0], [0], [1], [0, 0, 1, 1], [], []>} : vector<16x8xf32>, vector<8x16xf32>, vector<16x16xf32> -> vector<16x16xf32>
    %cst_9 = arith.constant 0.353553385 : f32
    %16 = vector.broadcast %cst_9 : f32 to vector<16x16xf32>
    %17 = arith.mulf %15, %16 : vector<16x16xf32>
    %18 = arith.addf %17, %10 : vector<16x16xf32>
    %cst_10 = arith.constant dense<0xFF800000> : vector<16xf32>
    %19 = vector.multi_reduction <maximumf>, %18, %cst_10 [1] : vector<16x16xf32> to vector<16xf32>
    %20 = vector.shape_cast %19 : vector<16xf32> to vector<16x1xf32>
    %21 = vector.broadcast %20 : vector<16x1xf32> to vector<16x16xf32>
    %22 = arith.subf %18, %21 : vector<16x16xf32>
    %23 = math.exp %22 : vector<16x16xf32>
    %cst_11 = arith.constant dense<0.000000e+00> : vector<16xf32>
    %24 = vector.multi_reduction <add>, %23, %cst_11 [1] : vector<16x16xf32> to vector<16xf32>
    %25 = vector.shape_cast %24 : vector<16xf32> to vector<16x1xf32>
    %26 = tpu.reciprocal %25 {approx = true} : vector<16x1xf32> -> vector<16x1xf32>
    %27 = vector.broadcast %26 : vector<16x1xf32> to vector<16x16xf32>
    %28 = arith.mulf %23, %27 : vector<16x16xf32>
    %cst_12 = arith.constant dense<0.000000e+00> : vector<16x8xf32>
    %29 = tpu.matmul %28, %13, %cst_12 {dimension_numbers = #tpu.dot_dimension_numbers<[1], [0], [0], [1], [0, 0, 1, 1], [], []>} : vector<16x16xf32>, vector<16x8xf32>, vector<16x8xf32> -> vector<16x8xf32>
    %30 = vector.extract_strided_slice %7 {offsets = [0, 8], sizes = [16, 8], strides = [1, 1]} : vector<16x48xf32> to vector<16x8xf32>
    %31 = vector.extract_strided_slice %8 {offsets = [0, 8], sizes = [16, 8], strides = [1, 1]} : vector<16x48xf32> to vector<16x8xf32>
    %32 = vector.extract_strided_slice %9 {offsets = [0, 8], sizes = [16, 8], strides = [1, 1]} : vector<16x48xf32> to vector<16x8xf32>
    %33 = tpu.transpose %31, [1, 0] : vector<16x8xf32> -> vector<8x16xf32>
    %cst_13 = arith.constant dense<0.000000e+00> : vector<16x16xf32>
    %34 = tpu.matmul %30, %33, %cst_13 {dimension_numbers = #tpu.dot_dimension_numbers<[1], [0], [0], [1], [0, 0, 1, 1], [], []>} : vector<16x8xf32>, vector<8x16xf32>, vector<16x16xf32> -> vector<16x16xf32>
    %cst_14 = arith.constant 0.353553385 : f32
    %35 = vector.broadcast %cst_14 : f32 to vector<16x16xf32>
    %36 = arith.mulf %34, %35 : vector<16x16xf32>
    %37 = arith.addf %36, %10 : vector<16x16xf32>
    %cst_15 = arith.constant dense<0xFF800000> : vector<16xf32>
    %38 = vector.multi_reduction <maximumf>, %37, %cst_15 [1] : vector<16x16xf32> to vector<16xf32>
    %39 = vector.shape_cast %38 : vector<16xf32> to vector<16x1xf32>
    %40 = vector.broadcast %39 : vector<16x1xf32> to vector<16x16xf32>
    %41 = arith.subf %37, %40 : vector<16x16xf32>
    %42 = math.exp %41 : vector<16x16xf32>
    %cst_16 = arith.constant dense<0.000000e+00> : vector<16xf32>
    %43 = vector.multi_reduction <add>, %42, %cst_16 [1] : vector<16x16xf32> to vector<16xf32>
    %44 = vector.shape_cast %43 : vector<16xf32> to vector<16x1xf32>
    %45 = tpu.reciprocal %44 {approx = true} : vector<16x1xf32> -> vector<16x1xf32>
    %46 = vector.broadcast %45 : vector<16x1xf32> to vector<16x16xf32>
    %47 = arith.mulf %42, %46 : vector<16x16xf32>
    %cst_17 = arith.constant dense<0.000000e+00> : vector<16x8xf32>
    %48 = tpu.matmul %47, %32, %cst_17 {dimension_numbers = #tpu.dot_dimension_numbers<[1], [0], [0], [1], [0, 0, 1, 1], [], []>} : vector<16x16xf32>, vector<16x8xf32>, vector<16x8xf32> -> vector<16x8xf32>
    %49 = vector.extract_strided_slice %7 {offsets = [0, 16], sizes = [16, 8], strides = [1, 1]} : vector<16x48xf32> to vector<16x8xf32>
    %50 = vector.extract_strided_slice %8 {offsets = [0, 16], sizes = [16, 8], strides = [1, 1]} : vector<16x48xf32> to vector<16x8xf32>
    %51 = vector.extract_strided_slice %9 {offsets = [0, 16], sizes = [16, 8], strides = [1, 1]} : vector<16x48xf32> to vector<16x8xf32>
    %52 = tpu.transpose %50, [1, 0] : vector<16x8xf32> -> vector<8x16xf32>
    %cst_18 = arith.constant dense<0.000000e+00> : vector<16x16xf32>
    %53 = tpu.matmul %49, %52, %cst_18 {dimension_numbers = #tpu.dot_dimension_numbers<[1], [0], [0], [1], [0, 0, 1, 1], [], []>} : vector<16x8xf32>, vector<8x16xf32>, vector<16x16xf32> -> vector<16x16xf32>
    %cst_19 = arith.constant 0.353553385 : f32
    %54 = vector.broadcast %cst_19 : f32 to vector<16x16xf32>
    %55 = arith.mulf %53, %54 : vector<16x16xf32>
    %56 = arith.addf %55, %10 : vector<16x16xf32>
    %cst_20 = arith.constant dense<0xFF800000> : vector<16xf32>
    %57 = vector.multi_reduction <maximumf>, %56, %cst_20 [1] : vector<16x16xf32> to vector<16xf32>
    %58 = vector.shape_cast %57 : vector<16xf32> to vector<16x1xf32>
    %59 = vector.broadcast %58 : vector<16x1xf32> to vector<16x16xf32>
    %60 = arith.subf %56, %59 : vector<16x16xf32>
    %61 = math.exp %60 : vector<16x16xf32>
    %cst_21 = arith.constant dense<0.000000e+00> : vector<16xf32>
    %62 = vector.multi_reduction <add>, %61, %cst_21 [1] : vector<16x16xf32> to vector<16xf32>
    %63 = vector.shape_cast %62 : vector<16xf32> to vector<16x1xf32>
    %64 = tpu.reciprocal %63 {approx = true} : vector<16x1xf32> -> vector<16x1xf32>
    %65 = vector.broadcast %64 : vector<16x1xf32> to vector<16x16xf32>
    %66 = arith.mulf %61, %65 : vector<16x16xf32>
    %cst_22 = arith.constant dense<0.000000e+00> : vector<16x8xf32>
    %67 = tpu.matmul %66, %51, %cst_22 {dimension_numbers = #tpu.dot_dimension_numbers<[1], [0], [0], [1], [0, 0, 1, 1], [], []>} : vector<16x16xf32>, vector<16x8xf32>, vector<16x8xf32> -> vector<16x8xf32>
    %68 = vector.extract_strided_slice %7 {offsets = [0, 24], sizes = [16, 8], strides = [1, 1]} : vector<16x48xf32> to vector<16x8xf32>
    %69 = vector.extract_strided_slice %8 {offsets = [0, 24], sizes = [16, 8], strides = [1, 1]} : vector<16x48xf32> to vector<16x8xf32>
    %70 = vector.extract_strided_slice %9 {offsets = [0, 24], sizes = [16, 8], strides = [1, 1]} : vector<16x48xf32> to vector<16x8xf32>
    %71 = tpu.transpose %69, [1, 0] : vector<16x8xf32> -> vector<8x16xf32>
    %cst_23 = arith.constant dense<0.000000e+00> : vector<16x16xf32>
    %72 = tpu.matmul %68, %71, %cst_23 {dimension_numbers = #tpu.dot_dimension_numbers<[1], [0], [0], [1], [0, 0, 1, 1], [], []>} : vector<16x8xf32>, vector<8x16xf32>, vector<16x16xf32> -> vector<16x16xf32>
    %cst_24 = arith.constant 0.353553385 : f32
    %73 = vector.broadcast %cst_24 : f32 to vector<16x16xf32>
    %74 = arith.mulf %72, %73 : vector<16x16xf32>
    %75 = arith.addf %74, %10 : vector<16x16xf32>
    %cst_25 = arith.constant dense<0xFF800000> : vector<16xf32>
    %76 = vector.multi_reduction <maximumf>, %75, %cst_25 [1] : vector<16x16xf32> to vector<16xf32>
    %77 = vector.shape_cast %76 : vector<16xf32> to vector<16x1xf32>
    %78 = vector.broadcast %77 : vector<16x1xf32> to vector<16x16xf32>
    %79 = arith.subf %75, %78 : vector<16x16xf32>
    %80 = math.exp %79 : vector<16x16xf32>
    %cst_26 = arith.constant dense<0.000000e+00> : vector<16xf32>
    %81 = vector.multi_reduction <add>, %80, %cst_26 [1] : vector<16x16xf32> to vector<16xf32>
    %82 = vector.shape_cast %81 : vector<16xf32> to vector<16x1xf32>
    %83 = tpu.reciprocal %82 {approx = true} : vector<16x1xf32> -> vector<16x1xf32>
    %84 = vector.broadcast %83 : vector<16x1xf32> to vector<16x16xf32>
    %85 = arith.mulf %80, %84 : vector<16x16xf32>
    %cst_27 = arith.constant dense<0.000000e+00> : vector<16x8xf32>
    %86 = tpu.matmul %85, %70, %cst_27 {dimension_numbers = #tpu.dot_dimension_numbers<[1], [0], [0], [1], [0, 0, 1, 1], [], []>} : vector<16x16xf32>, vector<16x8xf32>, vector<16x8xf32> -> vector<16x8xf32>
    %87 = vector.extract_strided_slice %7 {offsets = [0, 32], sizes = [16, 8], strides = [1, 1]} : vector<16x48xf32> to vector<16x8xf32>
    %88 = vector.extract_strided_slice %8 {offsets = [0, 32], sizes = [16, 8], strides = [1, 1]} : vector<16x48xf32> to vector<16x8xf32>
    %89 = vector.extract_strided_slice %9 {offsets = [0, 32], sizes = [16, 8], strides = [1, 1]} : vector<16x48xf32> to vector<16x8xf32>
    %90 = tpu.transpose %88, [1, 0] : vector<16x8xf32> -> vector<8x16xf32>
    %cst_28 = arith.constant dense<0.000000e+00> : vector<16x16xf32>
    %91 = tpu.matmul %87, %90, %cst_28 {dimension_numbers = #tpu.dot_dimension_numbers<[1], [0], [0], [1], [0, 0, 1, 1], [], []>} : vector<16x8xf32>, vector<8x16xf32>, vector<16x16xf32> -> vector<16x16xf32>
    %cst_29 = arith.constant 0.353553385 : f32
    %92 = vector.broadcast %cst_29 : f32 to vector<16x16xf32>
    %93 = arith.mulf %91, %92 : vector<16x16xf32>
    %94 = arith.addf %93, %10 : vector<16x16xf32>
    %cst_30 = arith.constant dense<0xFF800000> : vector<16xf32>
    %95 = vector.multi_reduction <maximumf>, %94, %cst_30 [1] : vector<16x16xf32> to vector<16xf32>
    %96 = vector.shape_cast %95 : vector<16xf32> to vector<16x1xf32>
    %97 = vector.broadcast %96 : vector<16x1xf32> to vector<16x16xf32>
    %98 = arith.subf %94, %97 : vector<16x16xf32>
    %99 = math.exp %98 : vector<16x16xf32>
    %cst_31 = arith.constant dense<0.000000e+00> : vector<16xf32>
    %100 = vector.multi_reduction <add>, %99, %cst_31 [1] : vector<16x16xf32> to vector<16xf32>
    %101 = vector.shape_cast %100 : vector<16xf32> to vector<16x1xf32>
    %102 = tpu.reciprocal %101 {approx = true} : vector<16x1xf32> -> vector<16x1xf32>
    %103 = vector.broadcast %102 : vector<16x1xf32> to vector<16x16xf32>
    %104 = arith.mulf %99, %103 : vector<16x16xf32>
    %cst_32 = arith.constant dense<0.000000e+00> : vector<16x8xf32>
    %105 = tpu.matmul %104, %89, %cst_32 {dimension_numbers = #tpu.dot_dimension_numbers<[1], [0], [0], [1], [0, 0, 1, 1], [], []>} : vector<16x16xf32>, vector<16x8xf32>, vector<16x8xf32> -> vector<16x8xf32>
    %106 = vector.extract_strided_slice %7 {offsets = [0, 40], sizes = [16, 8], strides = [1, 1]} : vector<16x48xf32> to vector<16x8xf32>
    %107 = vector.extract_strided_slice %8 {offsets = [0, 40], sizes = [16, 8], strides = [1, 1]} : vector<16x48xf32> to vector<16x8xf32>
    %108 = vector.extract_strided_slice %9 {offsets = [0, 40], sizes = [16, 8], strides = [1, 1]} : vector<16x48xf32> to vector<16x8xf32>
    %109 = tpu.transpose %107, [1, 0] : vector<16x8xf32> -> vector<8x16xf32>
    %cst_33 = arith.constant dense<0.000000e+00> : vector<16x16xf32>
    %110 = tpu.matmul %106, %109, %cst_33 {dimension_numbers = #tpu.dot_dimension_numbers<[1], [0], [0], [1], [0, 0, 1, 1], [], []>} : vector<16x8xf32>, vector<8x16xf32>, vector<16x16xf32> -> vector<16x16xf32>
    %cst_34 = arith.constant 0.353553385 : f32
    %111 = vector.broadcast %cst_34 : f32 to vector<16x16xf32>
    %112 = arith.mulf %110, %111 : vector<16x16xf32>
    %113 = arith.addf %112, %10 : vector<16x16xf32>
    %cst_35 = arith.constant dense<0xFF800000> : vector<16xf32>
    %114 = vector.multi_reduction <maximumf>, %113, %cst_35 [1] : vector<16x16xf32> to vector<16xf32>
    %115 = vector.shape_cast %114 : vector<16xf32> to vector<16x1xf32>
    %116 = vector.broadcast %115 : vector<16x1xf32> to vector<16x16xf32>
    %117 = arith.subf %113, %116 : vector<16x16xf32>
    %118 = math.exp %117 : vector<16x16xf32>
    %cst_36 = arith.constant dense<0.000000e+00> : vector<16xf32>
    %119 = vector.multi_reduction <add>, %118, %cst_36 [1] : vector<16x16xf32> to vector<16xf32>
    %120 = vector.shape_cast %119 : vector<16xf32> to vector<16x1xf32>
    %121 = tpu.reciprocal %120 {approx = true} : vector<16x1xf32> -> vector<16x1xf32>
    %122 = vector.broadcast %121 : vector<16x1xf32> to vector<16x16xf32>
    %123 = arith.mulf %118, %122 : vector<16x16xf32>
    %cst_37 = arith.constant dense<0.000000e+00> : vector<16x8xf32>
    %124 = tpu.matmul %123, %108, %cst_37 {dimension_numbers = #tpu.dot_dimension_numbers<[1], [0], [0], [1], [0, 0, 1, 1], [], []>} : vector<16x16xf32>, vector<16x8xf32>, vector<16x8xf32> -> vector<16x8xf32>
    %125 = tpu.concatenate %29, %48, %67, %86, %105, %124 in 1 : vector<16x8xf32>, vector<16x8xf32>, vector<16x8xf32>, vector<16x8xf32>, vector<16x8xf32>, vector<16x8xf32> -> vector<16x48xf32>
    %c0_38 = arith.constant 0 : index
    %c0_39 = arith.constant 0 : index
    %126 = vector.load %arg9[%c0_38, %c0_39] : memref<6x48xf32, #tpu.memory_space<vmem>>, vector<1x48xf32>
    %c1 = arith.constant 1 : index
    %c0_40 = arith.constant 0 : index
    %127 = vector.load %arg9[%c1, %c0_40] : memref<6x48xf32, #tpu.memory_space<vmem>>, vector<1x48xf32>
    %c2 = arith.constant 2 : index
    %c0_41 = arith.constant 0 : index
    %128 = vector.load %arg9[%c2, %c0_41] : memref<6x48xf32, #tpu.memory_space<vmem>>, vector<1x48xf32>
    %c3 = arith.constant 3 : index
    %c0_42 = arith.constant 0 : index
    %129 = vector.load %arg9[%c3, %c0_42] : memref<6x48xf32, #tpu.memory_space<vmem>>, vector<1x48xf32>
    %c4 = arith.constant 4 : index
    %c0_43 = arith.constant 0 : index
    %130 = vector.load %arg9[%c4, %c0_43] : memref<6x48xf32, #tpu.memory_space<vmem>>, vector<1x48xf32>
    %c5 = arith.constant 5 : index
    %c0_44 = arith.constant 0 : index
    %131 = vector.load %arg9[%c5, %c0_44] : memref<6x48xf32, #tpu.memory_space<vmem>>, vector<1x48xf32>
    %c0_45 = arith.constant 0 : index
    %c0_46 = arith.constant 0 : index
    %132 = vector.load %arg7[%c0_45, %c0_46] : memref<48x48xf32, #tpu.memory_space<vmem>>, vector<48x48xf32>
    %cst_47 = arith.constant dense<0.000000e+00> : vector<16x48xf32>
    %133 = tpu.matmul %125, %132, %cst_47 {dimension_numbers = #tpu.dot_dimension_numbers<[1], [0], [0], [1], [0, 0, 1, 1], [], []>} : vector<16x48xf32>, vector<48x48xf32>, vector<16x48xf32> -> vector<16x48xf32>
    %134 = vector.broadcast %126 : vector<1x48xf32> to vector<16x48xf32>
    %135 = arith.addf %133, %134 : vector<16x48xf32>
    %136 = arith.addf %1, %135 : vector<16x48xf32>
    %cst_48 = arith.constant dense<0.000000e+00> : vector<16xf32>
    %137 = vector.multi_reduction <add>, %136, %cst_48 [1] : vector<16x48xf32> to vector<16xf32>
    %138 = vector.shape_cast %137 : vector<16xf32> to vector<16x1xf32>
    %cst_49 = arith.constant 4.800000e+01 : f32
    %139 = vector.broadcast %cst_49 : f32 to vector<16x1xf32>
    %140 = arith.divf %138, %139 : vector<16x1xf32>
    %141 = vector.broadcast %140 : vector<16x1xf32> to vector<16x48xf32>
    %142 = arith.subf %136, %141 : vector<16x48xf32>
    %143 = arith.mulf %142, %142 : vector<16x48xf32>
    %cst_50 = arith.constant dense<0.000000e+00> : vector<16xf32>
    %144 = vector.multi_reduction <add>, %143, %cst_50 [1] : vector<16x48xf32> to vector<16xf32>
    %145 = vector.shape_cast %144 : vector<16xf32> to vector<16x1xf32>
    %cst_51 = arith.constant 4.800000e+01 : f32
    %146 = vector.broadcast %cst_51 : f32 to vector<16x1xf32>
    %147 = arith.divf %145, %146 : vector<16x1xf32>
    %148 = vector.broadcast %140 : vector<16x1xf32> to vector<16x48xf32>
    %149 = arith.subf %136, %148 : vector<16x48xf32>
    %cst_52 = arith.constant 9.99999974E-6 : f32
    %150 = vector.broadcast %cst_52 : f32 to vector<16x1xf32>
    %151 = arith.addf %147, %150 : vector<16x1xf32>
    %152 = math.rsqrt %151 : vector<16x1xf32>
    %153 = vector.broadcast %152 : vector<16x1xf32> to vector<16x48xf32>
    %154 = arith.mulf %149, %153 : vector<16x48xf32>
    %155 = vector.broadcast %127 : vector<1x48xf32> to vector<16x48xf32>
    %156 = arith.mulf %154, %155 : vector<16x48xf32>
    %157 = vector.broadcast %128 : vector<1x48xf32> to vector<16x48xf32>
    %158 = arith.addf %156, %157 : vector<16x48xf32>
    %c0_53 = arith.constant 0 : index
    %c0_54 = arith.constant 0 : index
    %159 = vector.load %arg8[%c0_53, %c0_54] : memref<48x96xf32, #tpu.memory_space<vmem>>, vector<48x96xf32>
    %cst_55 = arith.constant dense<0.000000e+00> : vector<16x96xf32>
    %160 = tpu.matmul %158, %159, %cst_55 {dimension_numbers = #tpu.dot_dimension_numbers<[1], [0], [0], [1], [0, 0, 1, 1], [], []>} : vector<16x48xf32>, vector<48x96xf32>, vector<16x96xf32> -> vector<16x96xf32>
    %161 = vector.extract_strided_slice %160 {offsets = [0, 0], sizes = [16, 48], strides = [1, 1]} : vector<16x96xf32> to vector<16x48xf32>
    %162 = vector.extract_strided_slice %160 {offsets = [0, 48], sizes = [16, 48], strides = [1, 1]} : vector<16x96xf32> to vector<16x48xf32>
    %c0_56 = arith.constant 0 : index
    %c0_57 = arith.constant 0 : index
    %163 = vector.load %arg4[%c0_56, %c0_57] : memref<16x1xf32, #tpu.memory_space<vmem>>, vector<16x1xf32>
    %164 = vector.broadcast %163 : vector<16x1xf32> to vector<16x48xf32>
    %165 = arith.mulf %164, %161 : vector<16x48xf32>
    %c0_58 = arith.constant 0 : index
    %c0_59 = arith.constant 0 : index
    %166 = vector.load %arg3[%c0_58, %c0_59] : memref<16x16xf32, #tpu.memory_space<vmem>>, vector<16x16xf32>
    %cst_60 = arith.constant dense<0.000000e+00> : vector<16x48xf32>
    %167 = tpu.matmul %166, %162, %cst_60 {dimension_numbers = #tpu.dot_dimension_numbers<[1], [0], [0], [1], [0, 0, 1, 1], [], []>} : vector<16x16xf32>, vector<16x48xf32>, vector<16x48xf32> -> vector<16x48xf32>
    %168 = arith.addf %165, %167 : vector<16x48xf32>
    %169 = vector.broadcast %129 : vector<1x48xf32> to vector<16x48xf32>
    %170 = arith.addf %168, %169 : vector<16x48xf32>
    %171 = arith.addf %158, %170 : vector<16x48xf32>
    %cst_61 = arith.constant dense<0.000000e+00> : vector<16xf32>
    %172 = vector.multi_reduction <add>, %171, %cst_61 [1] : vector<16x48xf32> to vector<16xf32>
    %173 = vector.shape_cast %172 : vector<16xf32> to vector<16x1xf32>
    %cst_62 = arith.constant 4.800000e+01 : f32
    %174 = vector.broadcast %cst_62 : f32 to vector<16x1xf32>
    %175 = arith.divf %173, %174 : vector<16x1xf32>
    %176 = vector.broadcast %175 : vector<16x1xf32> to vector<16x48xf32>
    %177 = arith.subf %171, %176 : vector<16x48xf32>
    %178 = arith.mulf %177, %177 : vector<16x48xf32>
    %cst_63 = arith.constant dense<0.000000e+00> : vector<16xf32>
    %179 = vector.multi_reduction <add>, %178, %cst_63 [1] : vector<16x48xf32> to vector<16xf32>
    %180 = vector.shape_cast %179 : vector<16xf32> to vector<16x1xf32>
    %cst_64 = arith.constant 4.800000e+01 : f32
    %181 = vector.broadcast %cst_64 : f32 to vector<16x1xf32>
    %182 = arith.divf %180, %181 : vector<16x1xf32>
    %183 = vector.broadcast %175 : vector<16x1xf32> to vector<16x48xf32>
    %184 = arith.subf %171, %183 : vector<16x48xf32>
    %cst_65 = arith.constant 9.99999974E-6 : f32
    %185 = vector.broadcast %cst_65 : f32 to vector<16x1xf32>
    %186 = arith.addf %182, %185 : vector<16x1xf32>
    %187 = math.rsqrt %186 : vector<16x1xf32>
    %188 = vector.broadcast %187 : vector<16x1xf32> to vector<16x48xf32>
    %189 = arith.mulf %184, %188 : vector<16x48xf32>
    %190 = vector.broadcast %130 : vector<1x48xf32> to vector<16x48xf32>
    %191 = arith.mulf %189, %190 : vector<16x48xf32>
    %192 = vector.broadcast %131 : vector<1x48xf32> to vector<16x48xf32>
    %193 = arith.addf %191, %192 : vector<16x48xf32>
    %c0_66 = arith.constant 0 : index
    %c0_67 = arith.constant 0 : index
    %c0_68 = arith.constant 0 : index
    %194 = vector.load %arg10[%c0_66, %c0_67, %c0_68] : memref<1x16x48xf32, #tpu.memory_space<vmem>>, vector<1x16x48xf32>
    %195 = vector.shape_cast %194 : vector<1x16x48xf32> to vector<16x48xf32>
    %196 = vector.shape_cast %193 : vector<16x48xf32> to vector<1x16x48xf32>
    tpu.vector_store %arg10[%c0_66, %c0_67, %c0_68], %196 {strides = array<i32>} : memref<1x16x48xf32, #tpu.memory_space<vmem>>, vector<1x16x48xf32>,
    return
  }
  func.func @transform_0(%arg0: i32) -> (i32, i32, i32) {
    %c0_i32 = arith.constant 0 : i32
    %c0_i32_0 = arith.constant 0 : i32
    %c0_i32_1 = arith.constant 0 : i32
    return %arg0, %c0_i32, %c0_i32_0 : i32, i32, i32
  }
  func.func @transform_1(%arg0: i32) -> (i32, i32) {
    %c0_i32 = arith.constant 0 : i32
    %c0_i32_0 = arith.constant 0 : i32
    %c0_i32_1 = arith.constant 0 : i32
    return %c0_i32, %c0_i32_0 : i32, i32
  }
  func.func @transform_2(%arg0: i32) -> (i32, i32) {
    %c0_i32 = arith.constant 0 : i32
    %c0_i32_0 = arith.constant 0 : i32
    %c0_i32_1 = arith.constant 0 : i32
    return %c0_i32, %c0_i32_0 : i32, i32
  }
  func.func @transform_3(%arg0: i32) -> (i32, i32) {
    %c0_i32 = arith.constant 0 : i32
    %c0_i32_0 = arith.constant 0 : i32
    %c0_i32_1 = arith.constant 0 : i32
    return %c0_i32, %c0_i32_0 : i32, i32
  }
  func.func @transform_4(%arg0: i32) -> (i32, i32) {
    %c0_i32 = arith.constant 0 : i32
    %c0_i32_0 = arith.constant 0 : i32
    %c0_i32_1 = arith.constant 0 : i32
    return %c0_i32, %c0_i32_0 : i32, i32
  }
  func.func @transform_5(%arg0: i32) -> (i32, i32) {
    %c0_i32 = arith.constant 0 : i32
    %c0_i32_0 = arith.constant 0 : i32
    %c0_i32_1 = arith.constant 0 : i32
    return %c0_i32, %c0_i32_0 : i32, i32
  }
  func.func @transform_6(%arg0: i32) -> (i32, i32) {
    %c0_i32 = arith.constant 0 : i32
    %c0_i32_0 = arith.constant 0 : i32
    %c0_i32_1 = arith.constant 0 : i32
    return %c0_i32, %c0_i32_0 : i32, i32
  }
  func.func @transform_7(%arg0: i32) -> (i32, i32) {
    %c0_i32 = arith.constant 0 : i32
    %c0_i32_0 = arith.constant 0 : i32
    %c0_i32_1 = arith.constant 0 : i32
    return %c0_i32, %c0_i32_0 : i32, i32
  }
  func.func @transform_8(%arg0: i32) -> (i32, i32) {
    %c0_i32 = arith.constant 0 : i32
    %c0_i32_0 = arith.constant 0 : i32
    %c0_i32_1 = arith.constant 0 : i32
    return %c0_i32, %c0_i32_0 : i32, i32
  }
  func.func @transform_9(%arg0: i32) -> (i32, i32, i32) {
    %c0_i32 = arith.constant 0 : i32
    %c0_i32_0 = arith.constant 0 : i32
    %c0_i32_1 = arith.constant 0 : i32
    return %arg0, %c0_i32, %c0_i32_0 : i32, i32, i32
  }
}

</mosaic_0001>

<llo_original>
// kernel: tpu_custom_call.1
$region0: #{tpu_custom_call.1}
  #allocation0 [shape = 'u32[]', space=smem, size = 0x4, offset = 0x4, fixed_abs, tag = 'smem constant byte address 0x4 - core index']
  #allocation1 [shape = 'u32[144,128]{1,0:T(1,128)}', space=vmem, size = 0x12000, scoped, tag = 'internal scratch']
  %s0 = inlined_call_operand.vmem [shape: f32[1,16,48], index: 0, kind: input, shape index: {}]
  %s1 = inlined_call_operand.hbm [shape: f32[16,16], index: 1, kind: input, shape index: {}]
  %s2 = inlined_call_operand.hbm [shape: f32[16,16], index: 2, kind: input, shape index: {}]
  %s3 = inlined_call_operand.vmem [shape: f32[16,1], index: 3, kind: input, shape index: {}]
  %s4 = inlined_call_operand.hbm [shape: f32[48,144], index: 4, kind: input, shape index: {}]
  %s5 = inlined_call_operand.vmem [shape: f32[1,144], index: 5, kind: input, shape index: {}]
  %s6 = inlined_call_operand.hbm [shape: f32[48,48], index: 6, kind: input, shape index: {}]
  %s7 = inlined_call_operand.hbm [shape: f32[48,96], index: 7, kind: input, shape index: {}]
  %s8 = inlined_call_operand.vmem [shape: f32[6,48], index: 8, kind: input, shape index: {}]
  %s9 = inlined_call_operand.hbm [shape: f32[1,16,48], index: 9, kind: output, shape index: {}]
  %s10 = sld [smem:[#allocation0]]
  $region66: #{tpu_custom_call.1} parent=0
    _
  %s12 = ssub.s32 1, %s10
  %s13 = scalar_select 0, %s12, %s10
  $region1: #{tpu_custom_call.1} parent=0
    #allocation2 [shape = 'u8[8192]{0}', space=vmem, size = 0x2000, scoped, tag = 'input window, operand 1, single buffered']
    #allocation3 [shape = 's32[1]{0}', space=sflag, size = 0x4, scoped, tag = 'scoped memory for tpu_custom_call.1']
    #allocation4 [shape = 's32[1]{0}', space=sflag, size = 0x4, scoped, tag = 'scoped memory for tpu_custom_call.1']
    #allocation5 [shape = 'u8[8192]{0}', space=vmem, size = 0x2000, scoped, tag = 'input window, operand 2, single buffered']
    #allocation6 [shape = 's32[1]{0}', space=sflag, size = 0x4, scoped, tag = 'scoped memory for tpu_custom_call.1']
    #allocation7 [shape = 'u8[49152]{0}', space=vmem, size = 0xc000, scoped, tag = 'input window, operand 4, single buffered']
    #allocation8 [shape = 'u8[24576]{0}', space=vmem, size = 0x6000, scoped, tag = 'input window, operand 6, single buffered']
    #allocation9 [shape = 's32[1]{0}', space=sflag, size = 0x4, scoped, tag = 'scoped memory for tpu_custom_call.1']
    #allocation10 [shape = 'u8[24576]{0}', space=vmem, size = 0x6000, scoped, tag = 'input window, operand 7, single buffered']
    #allocation11 [shape = 'u8[8192]{0}', space=vmem, size = 0x2000, scoped, tag = 'output window, operand 0, single buffered']
    %14 = vsyncpa [#allocation3], 0
    %15 = vsyncpa [#allocation6], 0
    %16 = vsyncpa [#allocation9], 0
    %17 = vsyncpa [#allocation4], 0
    // Predicated region
    $region2: #{tpu_custom_call.1} parent=1 // pred_check
      _
    $region3: #{tpu_custom_call.1} parent=1 // pred_check_branch
      %19 = sbr.rel (0) target = $region5
    $region4: #{tpu_custom_call.1} parent=1 // pred_region
      _
    $region5: #{tpu_custom_call.1} parent=1 // pred_fallthru
      _
    // Predicated region
    $region6: #{tpu_custom_call.1} parent=1 // pred_check
      _
    $region7: #{tpu_custom_call.1} parent=1 // pred_check_branch
      %21 = sbr.rel (0) target = $region9
    $region8: #{tpu_custom_call.1} parent=1 // pred_region
      %s23 = ssub.s32 256, 256
      %24 = vsyncadd [#allocation3], %s23
      %s25 = sshll.u32 [#allocation2], 4
      %s26 = int_to_ptr.vmem [resolvable:$true] %s25
      %31 = dma.hbm_to_vmem [thread:$0]  %s1, 256, %s26, [#allocation3], 128, 128, 8
    $region9: #{tpu_custom_call.1} parent=1 // pred_fallthru
      _
    // Predicated region
    $region10: #{tpu_custom_call.1} parent=1 // pred_check
      _
    $region11: #{tpu_custom_call.1} parent=1 // pred_check_branch
      %33 = sbr.rel (0) target = $region13
    $region12: #{tpu_custom_call.1} parent=1 // pred_region
      %s35 = ssub.s32 256, 256
      %36 = vsyncadd [#allocation6], %s35
      %s37 = sshll.u32 [#allocation5], 4
      %s38 = int_to_ptr.vmem [resolvable:$true] %s37
      %43 = dma.hbm_to_vmem [thread:$0]  %s2, 256, %s38, [#allocation6], 128, 128, 8
    $region13: #{tpu_custom_call.1} parent=1 // pred_fallthru
      _
    // Predicated region
    $region14: #{tpu_custom_call.1} parent=1 // pred_check
      _
    $region15: #{tpu_custom_call.1} parent=1 // pred_check_branch
      %45 = sbr.rel (0) target = $region17
    $region16: #{tpu_custom_call.1} parent=1 // pred_region
      _
    $region17: #{tpu_custom_call.1} parent=1 // pred_fallthru
      _
    // Predicated region
    $region18: #{tpu_custom_call.1} parent=1 // pred_check
      _
    $region19: #{tpu_custom_call.1} parent=1 // pred_check_branch
      %47 = sbr.rel (0) target = $region21
    $region20: #{tpu_custom_call.1} parent=1 // pred_region
      %s49 = ssub.s32 1536, 1536
      %50 = vsyncadd [#allocation6], %s49
      %s51 = sshll.u32 [#allocation7], 4
      %s52 = int_to_ptr.vmem [resolvable:$true] %s51
      %57 = dma.hbm_to_vmem [thread:$0]  %s4, 1536, %s52, [#allocation6], 256, 256, 16
    $region21: #{tpu_custom_call.1} parent=1 // pred_fallthru
      _
    // Predicated region
    $region22: #{tpu_custom_call.1} parent=1 // pred_check
      _
    $region23: #{tpu_custom_call.1} parent=1 // pred_check_branch
      %59 = sbr.rel (0) target = $region25
    $region24: #{tpu_custom_call.1} parent=1 // pred_region
      _
    $region25: #{tpu_custom_call.1} parent=1 // pred_fallthru
      _
    // Predicated region
    $region26: #{tpu_custom_call.1} parent=1 // pred_check
      _
    $region27: #{tpu_custom_call.1} parent=1 // pred_check_branch
      %61 = sbr.rel (0) target = $region29
    $region28: #{tpu_custom_call.1} parent=1 // pred_region
      %s63 = ssub.s32 768, 768
      %64 = vsyncadd [#allocation9], %s63
      %s65 = sshll.u32 [#allocation8], 4
      %s66 = int_to_ptr.vmem [resolvable:$true] %s65
      %71 = dma.hbm_to_vmem [thread:$0]  %s6, 768, %s66, [#allocation9], 128, 128, 8
    $region29: #{tpu_custom_call.1} parent=1 // pred_fallthru
      _
    // Predicated region
    $region30: #{tpu_custom_call.1} parent=1 // pred_check
      _
    $region31: #{tpu_custom_call.1} parent=1 // pred_check_branch
      %73 = sbr.rel (0) target = $region33
    $region32: #{tpu_custom_call.1} parent=1 // pred_region
      %s75 = ssub.s32 768, 768
      %76 = vsyncadd [#allocation9], %s75
      %s77 = sshll.u32 [#allocation10], 4
      %s78 = int_to_ptr.vmem [resolvable:$true] %s77
      %83 = dma.hbm_to_vmem [thread:$0]  %s7, 768, %s78, [#allocation9], 128, 128, 8
    $region33: #{tpu_custom_call.1} parent=1 // pred_fallthru
      _
    // Predicated region
    $region34: #{tpu_custom_call.1} parent=1 // pred_check
      _
    $region35: #{tpu_custom_call.1} parent=1 // pred_check_branch
      %85 = sbr.rel (0) target = $region37
    $region36: #{tpu_custom_call.1} parent=1 // pred_region
      _
    $region37: #{tpu_custom_call.1} parent=1 // pred_fallthru
      _
    // Predicated region
    $region38: #{tpu_custom_call.1} parent=1 // pred_check
      _
    $region39: #{tpu_custom_call.1} parent=1 // pred_check_branch
      %87 = sbr.rel (0) target = $region41
    $region40: #{tpu_custom_call.1} parent=1 // pred_region
      %88 = dma.done [#allocation3], 256
    $region41: #{tpu_custom_call.1} parent=1 // pred_fallthru
      _
    // Predicated region
    $region42: #{tpu_custom_call.1} parent=1 // pred_check
      _
    $region43: #{tpu_custom_call.1} parent=1 // pred_check_branch
      %90 = sbr.rel (0) target = $region45
    $region44: #{tpu_custom_call.1} parent=1 // pred_region
      %91 = dma.done [#allocation6], 256
    $region45: #{tpu_custom_call.1} parent=1 // pred_fallthru
      _
    // Predicated region
    $region46: #{tpu_custom_call.1} parent=1 // pred_check
      _
    $region47: #{tpu_custom_call.1} parent=1 // pred_check_branch
      %93 = sbr.rel (0) target = $region49
    $region48: #{tpu_custom_call.1} parent=1 // pred_region
      %94 = dma.done [#allocation6], 1536
    $region49: #{tpu_custom_call.1} parent=1 // pred_fallthru
      _
    // Predicated region
    $region50: #{tpu_custom_call.1} parent=1 // pred_check
      _
    $region51: #{tpu_custom_call.1} parent=1 // pred_check_branch
      %96 = sbr.rel (0) target = $region53
    $region52: #{tpu_custom_call.1} parent=1 // pred_region
      %97 = dma.done [#allocation9], 768
    $region53: #{tpu_custom_call.1} parent=1 // pred_fallthru
      _
    // Predicated region
    $region54: #{tpu_custom_call.1} parent=1 // pred_check
      _
    $region55: #{tpu_custom_call.1} parent=1 // pred_check_branch
      %99 = sbr.rel (0) target = $region57
    $region56: #{tpu_custom_call.1} parent=1 // pred_region
      %100 = dma.done [#allocation9], 768
    $region57: #{tpu_custom_call.1} parent=1 // pred_fallthru
      _
    %v101 = vld [vmem:[%s0] sm:$0xff]
    %v102 = vld [vmem:[%s0 + $0x8] sm:$0xff]
    %v103 = vld [vmem:[#allocation7] sm:$0xff]
    %v104 = vld [vmem:[#allocation7 + $0x8] sm:$0xff]
    %v105 = vld [vmem:[#allocation7 + $0x10] sm:$0xff]
    %v106 = vld [vmem:[#allocation7 + $0x18] sm:$0xff]
    %v107 = vld [vmem:[#allocation7 + $0x20] sm:$0xff]
    %v108 = vld [vmem:[#allocation7 + $0x28] sm:$0xff]
    %v109 = vld [vmem:[#allocation7 + $0x30] sm:$0xff]
    %v110 = vld [vmem:[#allocation7 + $0x38] sm:$0xff]
    %v111 = vld [vmem:[#allocation7 + $0x40] sm:$0xff]
    %v112 = vld [vmem:[#allocation7 + $0x48] sm:$0xff]
    %v113 = vld [vmem:[#allocation7 + $0x50] sm:$0xff]
    %v114 = vld [vmem:[#allocation7 + $0x58] sm:$0xff]
    %v115 = vld [vmem:[%s5] sm:$0x3]
    %v117 = vlaneseq
    %v118 = vshrl.u32 %v117, 7
    %v119 = vsub.s32 0, %v118
    %v120 = vrot.slane %v115, %v119
    %v121 = vlaneseq
    %v122 = vshrl.u32 %v121, 7
    %v123 = vsub.s32 1, %v122
    %v124 = vrot.slane %v115, %v123
    %vm127 = vcmask 392192
    %v129 = vsel %vm127, %v101, 0
    %v132 = vsel %vm127, %v102, 0
    %134 = vmatprep.subr.mxu0 0.0
    %135 = vmatpush1.msra.mxu0 0.0
    %136 = vmatprep.subr.mxu0 0.0
    %137 = vmatpush1.msra.mxu0 0.0
    %138 = vmatprep.subr.mxu0 0.0
    %139 = vmatpush1.msra.mxu0 0.0
    %140 = vmatprep.subr.mxu0 0.0
    %141 = vmatpush1.msra.mxu0 0.0
    %142 = vmatprep.subr.mxu0 0.0
    %143 = vmatpush1.msra.mxu0 0.0
    %144 = vmatprep.subr.mxu0 0.0
    %145 = vmatpush1.msra.mxu0 0.0
    %146 = vmatprep.subr.mxu0 0.0
    %147 = vmatpush1.msra.mxu0 0.0
    %148 = vmatprep.subr.mxu0 0.0
    %149 = vmatpush1.msra.mxu0 0.0
    %150 = vmatprep.subr.mxu0 0.0
    %151 = vmatpush1.msra.mxu0 0.0
    %152 = vmatprep.subr.mxu0 0.0
    %153 = vmatpush1.msra.mxu0 0.0
    %154 = vmatprep.subr.mxu0 %v114
    %155 = vmatpush1.msra.mxu0 %v113
    %156 = vmatprep.subr.mxu0 %v112
    %157 = vmatpush1.msra.mxu0 %v111
    %158 = vmatprep.subr.mxu0 %v110
    %159 = vmatpush1.msra.mxu0 %v109
    %160 = vmatprep.subr.mxu0 %v108
    %161 = vmatpush1.msra.mxu0 %v107
    %162 = vmatprep.subr.mxu0 %v106
    %163 = vmatpush1.msra.mxu0 %v105
    %164 = vmatprep.subr.mxu0 %v104
    %165 = vmatpush1.msra.mxu0 %v103
    %166 = vmatprep.subr.mxu0 0.0
    %167 = vmatpush2.msra.mxu0 0.0
    %168 = vmatprep.subr.mxu0 0.0
    %169 = vmatpush2.msra.mxu0 0.0
    %170 = vmatprep.subr.mxu0 0.0
    %171 = vmatpush2.msra.mxu0 0.0
    %172 = vmatprep.subr.mxu0 0.0
    %173 = vmatpush2.msra.mxu0 0.0
    %174 = vmatprep.subr.mxu0 0.0
    %175 = vmatpush2.msra.mxu0 0.0
    %176 = vmatprep.subr.mxu0 0.0
    %177 = vmatpush2.msra.mxu0 0.0
    %178 = vmatprep.subr.mxu0 0.0
    %179 = vmatpush2.msra.mxu0 0.0
    %180 = vmatprep.subr.mxu0 0.0
    %181 = vmatpush2.msra.mxu0 0.0
    %182 = vmatprep.subr.mxu0 0.0
    %183 = vmatpush2.msra.mxu0 0.0
    %184 = vmatprep.subr.mxu0 0.0
    %185 = vmatpush2.msra.mxu0 0.0
    %186 = vmatprep.subr.mxu0 0.0
    %187 = vmatpush2.msra.mxu0 0.0
    %188 = vmatprep.subr.mxu0 0.0
    %189 = vmatpush2.msra.mxu0 0.0
    %190 = vmatprep.subr.mxu0 0.0
    %191 = vmatpush2.msra.mxu0 0.0
    %192 = vmatprep.subr.mxu0 0.0
    %193 = vmatpush2.msra.mxu0 0.0
    %194 = vmatprep.subr.mxu0 0.0
    %195 = vmatpush2.msra.mxu0 0.0
    %196 = vmatprep.subr.mxu0 0.0
    %197 = vmatpush2.msra.mxu0 0.0
    %198 = vmatprep.mubr.f32.mxu0 0.0
    %199 = vmatmul.mubr.f32.gmra.mxu0 %v129
    %v200 = vpop.f32.mrf.mxu0
    %v201 = vadd.f32 %v120, %v200
    %v202 = vpop.f32.mrf.mxu0
    %v203 = vadd.f32 %v124, %v202
    %204 = vmatprep.mubr.f32.mxu0 0.0
    %205 = vmatmul.mubr.f32.gmra.mxu0 %v132
    %v206 = vpop.f32.mrf.mxu0
    %v207 = vadd.f32 %v120, %v206
    %v208 = vpop.f32.mrf.mxu0
    %v209 = vadd.f32 %v124, %v208
    %210 = vdwg.mxu0
    %v211 = vld [vmem:[#allocation2] sm:$0xff]
    %v212 = vld [vmem:[#allocation2 + $0x8] sm:$0xff]
    %215 = vrot.lane.b32.xlu0 %v201, 80
    %v216 = vpop.permute.xlu0 %215
    %217 = vrot.lane.b32.xlu0 %v207, 80
    %v218 = vpop.permute.xlu0 %217
    %vm219 = vcmask 64512
    %v220 = vsel %vm219, %v201, 0
    %v222 = vsel %vm219, %v207, 0
    %v224 = vsel %vm219, %v216, 0
    %v226 = vsel %vm219, %v218, 0
    %228 = vmatprep.subr.mxu0 0.0
    %229 = vmatpush1.xpose.msra.mxu0 0.0
    %230 = vmatprep.subr.mxu0 0.0
    %231 = vmatpush1.xpose.msra.mxu0 0.0
    %232 = vmatprep.subr.mxu0 0.0
    %233 = vmatpush1.xpose.msra.mxu0 0.0
    %234 = vmatprep.subr.mxu0 0.0
    %235 = vmatpush1.xpose.msra.mxu0 0.0
    %236 = vmatprep.subr.mxu0 0.0
    %237 = vmatpush1.xpose.msra.mxu0 0.0
    %238 = vmatprep.subr.mxu0 0.0
    %239 = vmatpush1.xpose.msra.mxu0 0.0
    %240 = vmatprep.subr.mxu0 0.0
    %241 = vmatpush1.xpose.msra.mxu0 0.0
    %242 = vmatprep.subr.mxu0 0.0
    %243 = vmatpush1.xpose.msra.mxu0 0.0
    %244 = vmatprep.subr.mxu0 0.0
    %245 = vmatpush1.xpose.msra.mxu0 0.0
    %246 = vmatprep.subr.mxu0 0.0
    %247 = vmatpush1.xpose.msra.mxu0 0.0
    %248 = vmatprep.subr.mxu0 0.0
    %249 = vmatpush1.xpose.msra.mxu0 0.0
    %250 = vmatprep.subr.mxu0 0.0
    %251 = vmatpush1.xpose.msra.mxu0 0.0
    %252 = vmatprep.subr.mxu0 0.0
    %253 = vmatpush1.xpose.msra.mxu0 0.0
    %254 = vmatprep.subr.mxu0 0.0
    %255 = vmatpush1.xpose.msra.mxu0 0.0
    %256 = vmatprep.subr.mxu0 0.0
    %257 = vmatpush1.xpose.msra.mxu0 %v226
    %258 = vmatprep.subr.mxu0 0.0
    %259 = vmatpush1.xpose.msra.mxu0 %v224
    %260 = vmatprep.subr.mxu0 0.0
    %261 = vmatpush2.xpose.msra.mxu0 0.0
    %262 = vmatprep.subr.mxu0 0.0
    %263 = vmatpush2.xpose.msra.mxu0 0.0
    %264 = vmatprep.subr.mxu0 0.0
    %265 = vmatpush2.xpose.msra.mxu0 0.0
    %266 = vmatprep.subr.mxu0 0.0
    %267 = vmatpush2.xpose.msra.mxu0 0.0
    %268 = vmatprep.subr.mxu0 0.0
    %269 = vmatpush2.xpose.msra.mxu0 0.0
    %270 = vmatprep.subr.mxu0 0.0
    %271 = vmatpush2.xpose.msra.mxu0 0.0
    %272 = vmatprep.subr.mxu0 0.0
    %273 = vmatpush2.xpose.msra.mxu0 0.0
    %274 = vmatprep.subr.mxu0 0.0
    %275 = vmatpush2.xpose.msra.mxu0 0.0
    %276 = vmatprep.subr.mxu0 0.0
    %277 = vmatpush2.xpose.msra.mxu0 0.0
    %278 = vmatprep.subr.mxu0 0.0
    %279 = vmatpush2.xpose.msra.mxu0 0.0
    %280 = vmatprep.subr.mxu0 0.0
    %281 = vmatpush2.xpose.msra.mxu0 0.0
    %282 = vmatprep.subr.mxu0 0.0
    %283 = vmatpush2.xpose.msra.mxu0 0.0
    %284 = vmatprep.subr.mxu0 0.0
    %285 = vmatpush2.xpose.msra.mxu0 0.0
    %286 = vmatprep.subr.mxu0 0.0
    %287 = vmatpush2.xpose.msra.mxu0 0.0
    %288 = vmatprep.subr.mxu0 0.0
    %289 = vmatpush2.xpose.msra.mxu0 0.0
    %290 = vmatprep.subr.mxu0 0.0
    %291 = vmatpush2.xpose.msra.mxu0 0.0
    %292 = vmatprep.mubr.f32.mxu0 0.0
    %293 = vmatmul.mubr.f32.gmra.mxu0 %v220
    %v294 = vpop.f32.mrf.mxu0
    %v295 = vadd.f32 0.0, %v294
    %v296 = vpop.f32.mrf.mxu0
    %297 = vmatprep.mubr.f32.mxu0 0.0
    %298 = vmatmul.mubr.f32.gmra.mxu0 %v222
    %v299 = vpop.f32.mrf.mxu0
    %v300 = vadd.f32 0.0, %v299
    %v301 = vpop.f32.mrf.mxu0
    %302 = vdwg.mxu0
    %v303 = vmul.f32 %v295, 0.35355338
    %v304 = vmul.f32 %v300, 0.35355338
    %v305 = vadd.f32 %v303, %v211
    %v306 = vadd.f32 %v304, %v212
    %vm307 = vcmask 130048
    %v308 = vsel %vm307, %v305, -inf
    %309 = vmax.xlane.f32.xlu0 %v308
    %v310 = vpop.xlane.xlu0 %309
    %v311 = vsel %vm307, %v306, -inf
    %312 = vmax.xlane.f32.xlu0 %v311
    %v313 = vpop.xlane.xlu0 %312
    %v314 = vsub.f32 %v305, %v310
    %v315 = vsub.f32 %v306, %v313
    %v316 = vmul.f32 %v314, 1.442695
    %v317 = vpow.pop %v316
    %v318 = vmul.f32 %v315, 1.442695
    %v319 = vpow.pop %v318
    %v320 = vsel %vm307, %v317, 0.0
    %321 = vadd.xlane.f32.xlu0 %v320
    %v322 = vpop.xlane.xlu0 %321
    %v323 = vsel %vm307, %v319, 0.0
    %324 = vadd.xlane.f32.xlu0 %v323
    %v325 = vpop.xlane.xlu0 %324
    %v326 = vrcp.pop %v322
    %v327 = vrcp.pop %v325
    %v328 = vmul.f32 %v317, %v326
    %v329 = vmul.f32 %v319, %v327
    %330 = vrot.lane.b32.xlu0 %v201, 32
    %v331 = vpop.permute.xlu0 %330
    %332 = vrot.lane.b32.xlu0 %v207, 32
    %v333 = vpop.permute.xlu0 %332
    %v337 = vsel %vm307, %v328, 0
    %v340 = vsel %vm307, %v329, 0
    %342 = vmatprep.subr.mxu0 0.0
    %343 = vmatpush1.msra.mxu0 0.0
    %344 = vmatprep.subr.mxu0 0.0
    %345 = vmatpush1.msra.mxu0 0.0
    %346 = vmatprep.subr.mxu0 0.0
    %347 = vmatpush1.msra.mxu0 0.0
    %348 = vmatprep.subr.mxu0 0.0
    %349 = vmatpush1.msra.mxu0 0.0
    %350 = vmatprep.subr.mxu0 0.0
    %351 = vmatpush1.msra.mxu0 0.0
    %352 = vmatprep.subr.mxu0 0.0
    %353 = vmatpush1.msra.mxu0 0.0
    %354 = vmatprep.subr.mxu0 0.0
    %355 = vmatpush1.msra.mxu0 0.0
    %356 = vmatprep.subr.mxu0 0.0
    %357 = vmatpush1.msra.mxu0 0.0
    %358 = vmatprep.subr.mxu0 0.0
    %359 = vmatpush1.msra.mxu0 0.0
    %360 = vmatprep.subr.mxu0 0.0
    %361 = vmatpush1.msra.mxu0 0.0
    %362 = vmatprep.subr.mxu0 0.0
    %363 = vmatpush1.msra.mxu0 0.0
    %364 = vmatprep.subr.mxu0 0.0
    %365 = vmatpush1.msra.mxu0 0.0
    %366 = vmatprep.subr.mxu0 0.0
    %367 = vmatpush1.msra.mxu0 0.0
    %368 = vmatprep.subr.mxu0 0.0
    %369 = vmatpush1.msra.mxu0 0.0
    %370 = vmatprep.subr.mxu0 0.0
    %371 = vmatpush1.msra.mxu0 %v333
    %372 = vmatprep.subr.mxu0 0.0
    %373 = vmatpush1.msra.mxu0 %v331
    %374 = vmatprep.subr.mxu0 0.0
    %375 = vmatpush2.msra.mxu0 0.0
    %376 = vmatprep.subr.mxu0 0.0
    %377 = vmatpush2.msra.mxu0 0.0
    %378 = vmatprep.subr.mxu0 0.0
    %379 = vmatpush2.msra.mxu0 0.0
    %380 = vmatprep.subr.mxu0 0.0
    %381 = vmatpush2.msra.mxu0 0.0
    %382 = vmatprep.subr.mxu0 0.0
    %383 = vmatpush2.msra.mxu0 0.0
    %384 = vmatprep.subr.mxu0 0.0
    %385 = vmatpush2.msra.mxu0 0.0
    %386 = vmatprep.subr.mxu0 0.0
    %387 = vmatpush2.msra.mxu0 0.0
    %388 = vmatprep.subr.mxu0 0.0
    %389 = vmatpush2.msra.mxu0 0.0
    %390 = vmatprep.subr.mxu0 0.0
    %391 = vmatpush2.msra.mxu0 0.0
    %392 = vmatprep.subr.mxu0 0.0
    %393 = vmatpush2.msra.mxu0 0.0
    %394 = vmatprep.subr.mxu0 0.0
    %395 = vmatpush2.msra.mxu0 0.0
    %396 = vmatprep.subr.mxu0 0.0
    %397 = vmatpush2.msra.mxu0 0.0
    %398 = vmatprep.subr.mxu0 0.0
    %399 = vmatpush2.msra.mxu0 0.0
    %400 = vmatprep.subr.mxu0 0.0
    %401 = vmatpush2.msra.mxu0 0.0
    %402 = vmatprep.subr.mxu0 0.0
    %403 = vmatpush2.msra.mxu0 0.0
    %404 = vmatprep.subr.mxu0 0.0
    %405 = vmatpush2.msra.mxu0 0.0
    %406 = vmatprep.mubr.f32.mxu0 0.0
    %407 = vmatmul.mubr.f32.gmra.mxu0 %v337
    %v408 = vpop.f32.mrf.mxu0
    %v409 = vadd.f32 0.0, %v408
    %v410 = vpop.f32.mrf.mxu0
    %411 = vmatprep.mubr.f32.mxu0 0.0
    %412 = vmatmul.mubr.f32.gmra.mxu0 %v340
    %v413 = vpop.f32.mrf.mxu0
    %v414 = vadd.f32 0.0, %v413
    %v415 = vpop.f32.mrf.mxu0
    %416 = vdwg.mxu0
    %417 = vrot.lane.b32.xlu0 %v201, 120
    %v418 = vpop.permute.xlu0 %417
    %419 = vrot.lane.b32.xlu0 %v207, 120
    %v420 = vpop.permute.xlu0 %419
    %421 = vrot.lane.b32.xlu0 %v201, 72
    %v422 = vpop.permute.xlu0 %421
    %423 = vrot.lane.b32.xlu0 %v207, 72
    %v424 = vpop.permute.xlu0 %423
    %v425 = vsel %vm219, %v418, 0
    %v427 = vsel %vm219, %v420, 0
    %v429 = vsel %vm219, %v422, 0
    %v431 = vsel %vm219, %v424, 0
    %433 = vmatprep.subr.mxu0 0.0
    %434 = vmatpush1.xpose.msra.mxu0 0.0
    %435 = vmatprep.subr.mxu0 0.0
    %436 = vmatpush1.xpose.msra.mxu0 0.0
    %437 = vmatprep.subr.mxu0 0.0
    %438 = vmatpush1.xpose.msra.mxu0 0.0
    %439 = vmatprep.subr.mxu0 0.0
    %440 = vmatpush1.xpose.msra.mxu0 0.0
    %441 = vmatprep.subr.mxu0 0.0
    %442 = vmatpush1.xpose.msra.mxu0 0.0
    %443 = vmatprep.subr.mxu0 0.0
    %444 = vmatpush1.xpose.msra.mxu0 0.0
    %445 = vmatprep.subr.mxu0 0.0
    %446 = vmatpush1.xpose.msra.mxu0 0.0
    %447 = vmatprep.subr.mxu0 0.0
    %448 = vmatpush1.xpose.msra.mxu0 0.0
    %449 = vmatprep.subr.mxu0 0.0
    %450 = vmatpush1.xpose.msra.mxu0 0.0
    %451 = vmatprep.subr.mxu0 0.0
    %452 = vmatpush1.xpose.msra.mxu0 0.0
    %453 = vmatprep.subr.mxu0 0.0
    %454 = vmatpush1.xpose.msra.mxu0 0.0
    %455 = vmatprep.subr.mxu0 0.0
    %456 = vmatpush1.xpose.msra.mxu0 0.0
    %457 = vmatprep.subr.mxu0 0.0
    %458 = vmatpush1.xpose.msra.mxu0 0.0
    %459 = vmatprep.subr.mxu0 0.0
    %460 = vmatpush1.xpose.msra.mxu0 0.0
    %461 = vmatprep.subr.mxu0 0.0
    %462 = vmatpush1.xpose.msra.mxu0 %v431
    %463 = vmatprep.subr.mxu0 0.0
    %464 = vmatpush1.xpose.msra.mxu0 %v429
    %465 = vmatprep.subr.mxu0 0.0
    %466 = vmatpush2.xpose.msra.mxu0 0.0
    %467 = vmatprep.subr.mxu0 0.0
    %468 = vmatpush2.xpose.msra.mxu0 0.0
    %469 = vmatprep.subr.mxu0 0.0
    %470 = vmatpush2.xpose.msra.mxu0 0.0
    %471 = vmatprep.subr.mxu0 0.0
    %472 = vmatpush2.xpose.msra.mxu0 0.0
    %473 = vmatprep.subr.mxu0 0.0
    %474 = vmatpush2.xpose.msra.mxu0 0.0
    %475 = vmatprep.subr.mxu0 0.0
    %476 = vmatpush2.xpose.msra.mxu0 0.0
    %477 = vmatprep.subr.mxu0 0.0
    %478 = vmatpush2.xpose.msra.mxu0 0.0
    %479 = vmatprep.subr.mxu0 0.0
    %480 = vmatpush2.xpose.msra.mxu0 0.0
    %481 = vmatprep.subr.mxu0 0.0
    %482 = vmatpush2.xpose.msra.mxu0 0.0
    %483 = vmatprep.subr.mxu0 0.0
    %484 = vmatpush2.xpose.msra.mxu0 0.0
    %485 = vmatprep.subr.mxu0 0.0
    %486 = vmatpush2.xpose.msra.mxu0 0.0
    %487 = vmatprep.subr.mxu0 0.0
    %488 = vmatpush2.xpose.msra.mxu0 0.0
    %489 = vmatprep.subr.mxu0 0.0
    %490 = vmatpush2.xpose.msra.mxu0 0.0
    %491 = vmatprep.subr.mxu0 0.0
    %492 = vmatpush2.xpose.msra.mxu0 0.0
    %493 = vmatprep.subr.mxu0 0.0
    %494 = vmatpush2.xpose.msra.mxu0 0.0
    %495 = vmatprep.subr.mxu0 0.0
    %496 = vmatpush2.xpose.msra.mxu0 0.0
    %497 = vmatprep.mubr.f32.mxu0 0.0
    %498 = vmatmul.mubr.f32.gmra.mxu0 %v425
    %v499 = vpop.f32.mrf.mxu0
    %v500 = vadd.f32 0.0, %v499
    %v501 = vpop.f32.mrf.mxu0
    %502 = vmatprep.mubr.f32.mxu0 0.0
    %503 = vmatmul.mubr.f32.gmra.mxu0 %v427
    %v504 = vpop.f32.mrf.mxu0
    %v505 = vadd.f32 0.0, %v504
    %v506 = vpop.f32.mrf.mxu0
    %507 = vdwg.mxu0
    %v508 = vmul.f32 %v500, 0.35355338
    %v509 = vmul.f32 %v505, 0.35355338
    %v510 = vadd.f32 %v508, %v211
    %v511 = vadd.f32 %v509, %v212
    %v512 = vsel %vm307, %v510, -inf
    %513 = vmax.xlane.f32.xlu0 %v512
    %v514 = vpop.xlane.xlu0 %513
    %v515 = vsel %vm307, %v511, -inf
    %516 = vmax.xlane.f32.xlu0 %v515
    %v517 = vpop.xlane.xlu0 %516
    %v518 = vsub.f32 %v510, %v514
    %v519 = vsub.f32 %v511, %v517
    %v520 = vmul.f32 %v518, 1.442695
    %v521 = vpow.pop %v520
    %v522 = vmul.f32 %v519, 1.442695
    %v523 = vpow.pop %v522
    %v524 = vsel %vm307, %v521, 0.0
    %525 = vadd.xlane.f32.xlu0 %v524
    %v526 = vpop.xlane.xlu0 %525
    %v527 = vsel %vm307, %v523, 0.0
    %528 = vadd.xlane.f32.xlu0 %v527
    %v529 = vpop.xlane.xlu0 %528
    %v530 = vrcp.pop %v526
    %v531 = vrcp.pop %v529
    %v532 = vmul.f32 %v521, %v530
    %v533 = vmul.f32 %v523, %v531
    %534 = vrot.lane.b32.xlu0 %v201, 24
    %v535 = vpop.permute.xlu0 %534
    %536 = vrot.lane.b32.xlu0 %v207, 24
    %v537 = vpop.permute.xlu0 %536
    %v541 = vsel %vm307, %v532, 0
    %v544 = vsel %vm307, %v533, 0
    %546 = vmatprep.subr.mxu0 0.0
    %547 = vmatpush1.msra.mxu0 0.0
    %548 = vmatprep.subr.mxu0 0.0
    %549 = vmatpush1.msra.mxu0 0.0
    %550 = vmatprep.subr.mxu0 0.0
    %551 = vmatpush1.msra.mxu0 0.0
    %552 = vmatprep.subr.mxu0 0.0
    %553 = vmatpush1.msra.mxu0 0.0
    %554 = vmatprep.subr.mxu0 0.0
    %555 = vmatpush1.msra.mxu0 0.0
    %556 = vmatprep.subr.mxu0 0.0
    %557 = vmatpush1.msra.mxu0 0.0
    %558 = vmatprep.subr.mxu0 0.0
    %559 = vmatpush1.msra.mxu0 0.0
    %560 = vmatprep.subr.mxu0 0.0
    %561 = vmatpush1.msra.mxu0 0.0
    %562 = vmatprep.subr.mxu0 0.0
    %563 = vmatpush1.msra.mxu0 0.0
    %564 = vmatprep.subr.mxu0 0.0
    %565 = vmatpush1.msra.mxu0 0.0
    %566 = vmatprep.subr.mxu0 0.0
    %567 = vmatpush1.msra.mxu0 0.0
    %568 = vmatprep.subr.mxu0 0.0
    %569 = vmatpush1.msra.mxu0 0.0
    %570 = vmatprep.subr.mxu0 0.0
    %571 = vmatpush1.msra.mxu0 0.0
    %572 = vmatprep.subr.mxu0 0.0
    %573 = vmatpush1.msra.mxu0 0.0
    %574 = vmatprep.subr.mxu0 0.0
    %575 = vmatpush1.msra.mxu0 %v537
    %576 = vmatprep.subr.mxu0 0.0
    %577 = vmatpush1.msra.mxu0 %v535
    %578 = vmatprep.subr.mxu0 0.0
    %579 = vmatpush2.msra.mxu0 0.0
    %580 = vmatprep.subr.mxu0 0.0
    %581 = vmatpush2.msra.mxu0 0.0
    %582 = vmatprep.subr.mxu0 0.0
    %583 = vmatpush2.msra.mxu0 0.0
    %584 = vmatprep.subr.mxu0 0.0
    %585 = vmatpush2.msra.mxu0 0.0
    %586 = vmatprep.subr.mxu0 0.0
    %587 = vmatpush2.msra.mxu0 0.0
    %588 = vmatprep.subr.mxu0 0.0
    %589 = vmatpush2.msra.mxu0 0.0
    %590 = vmatprep.subr.mxu0 0.0
    %591 = vmatpush2.msra.mxu0 0.0
    %592 = vmatprep.subr.mxu0 0.0
    %593 = vmatpush2.msra.mxu0 0.0
    %594 = vmatprep.subr.mxu0 0.0
    %595 = vmatpush2.msra.mxu0 0.0
    %596 = vmatprep.subr.mxu0 0.0
    %597 = vmatpush2.msra.mxu0 0.0
    %598 = vmatprep.subr.mxu0 0.0
    %599 = vmatpush2.msra.mxu0 0.0
    %600 = vmatprep.subr.mxu0 0.0
    %601 = vmatpush2.msra.mxu0 0.0
    %602 = vmatprep.subr.mxu0 0.0
    %603 = vmatpush2.msra.mxu0 0.0
    %604 = vmatprep.subr.mxu0 0.0
    %605 = vmatpush2.msra.mxu0 0.0
    %606 = vmatprep.subr.mxu0 0.0
    %607 = vmatpush2.msra.mxu0 0.0
    %608 = vmatprep.subr.mxu0 0.0
    %609 = vmatpush2.msra.mxu0 0.0
    %610 = vmatprep.mubr.f32.mxu0 0.0
    %611 = vmatmul.mubr.f32.gmra.mxu0 %v541
    %v612 = vpop.f32.mrf.mxu0
    %v613 = vadd.f32 0.0, %v612
    %v614 = vpop.f32.mrf.mxu0
    %615 = vmatprep.mubr.f32.mxu0 0.0
    %616 = vmatmul.mubr.f32.gmra.mxu0 %v544
    %v617 = vpop.f32.mrf.mxu0
    %v618 = vadd.f32 0.0, %v617
    %v619 = vpop.f32.mrf.mxu0
    %620 = vdwg.mxu0
    %621 = vrot.lane.b32.xlu0 %v201, 112
    %v622 = vpop.permute.xlu0 %621
    %623 = vrot.lane.b32.xlu0 %v207, 112
    %v624 = vpop.permute.xlu0 %623
    %625 = vrot.lane.b32.xlu0 %v201, 64
    %v626 = vpop.permute.xlu0 %625
    %627 = vrot.lane.b32.xlu0 %v207, 64
    %v628 = vpop.permute.xlu0 %627
    %v629 = vsel %vm219, %v622, 0
    %v631 = vsel %vm219, %v624, 0
    %v633 = vsel %vm219, %v626, 0
    %v635 = vsel %vm219, %v628, 0
    %637 = vmatprep.subr.mxu0 0.0
    %638 = vmatpush1.xpose.msra.mxu0 0.0
    %639 = vmatprep.subr.mxu0 0.0
    %640 = vmatpush1.xpose.msra.mxu0 0.0
    %641 = vmatprep.subr.mxu0 0.0
    %642 = vmatpush1.xpose.msra.mxu0 0.0
    %643 = vmatprep.subr.mxu0 0.0
    %644 = vmatpush1.xpose.msra.mxu0 0.0
    %645 = vmatprep.subr.mxu0 0.0
    %646 = vmatpush1.xpose.msra.mxu0 0.0
    %647 = vmatprep.subr.mxu0 0.0
    %648 = vmatpush1.xpose.msra.mxu0 0.0
    %649 = vmatprep.subr.mxu0 0.0
    %650 = vmatpush1.xpose.msra.mxu0 0.0
    %651 = vmatprep.subr.mxu0 0.0
    %652 = vmatpush1.xpose.msra.mxu0 0.0
    %653 = vmatprep.subr.mxu0 0.0
    %654 = vmatpush1.xpose.msra.mxu0 0.0
    %655 = vmatprep.subr.mxu0 0.0
    %656 = vmatpush1.xpose.msra.mxu0 0.0
    %657 = vmatprep.subr.mxu0 0.0
    %658 = vmatpush1.xpose.msra.mxu0 0.0
    %659 = vmatprep.subr.mxu0 0.0
    %660 = vmatpush1.xpose.msra.mxu0 0.0
    %661 = vmatprep.subr.mxu0 0.0
    %662 = vmatpush1.xpose.msra.mxu0 0.0
    %663 = vmatprep.subr.mxu0 0.0
    %664 = vmatpush1.xpose.msra.mxu0 0.0
    %665 = vmatprep.subr.mxu0 0.0
    %666 = vmatpush1.xpose.msra.mxu0 %v635
    %667 = vmatprep.subr.mxu0 0.0
    %668 = vmatpush1.xpose.msra.mxu0 %v633
    %669 = vmatprep.subr.mxu0 0.0
    %670 = vmatpush2.xpose.msra.mxu0 0.0
    %671 = vmatprep.subr.mxu0 0.0
    %672 = vmatpush2.xpose.msra.mxu0 0.0
    %673 = vmatprep.subr.mxu0 0.0
    %674 = vmatpush2.xpose.msra.mxu0 0.0
    %675 = vmatprep.subr.mxu0 0.0
    %676 = vmatpush2.xpose.msra.mxu0 0.0
    %677 = vmatprep.subr.mxu0 0.0
    %678 = vmatpush2.xpose.msra.mxu0 0.0
    %679 = vmatprep.subr.mxu0 0.0
    %680 = vmatpush2.xpose.msra.mxu0 0.0
    %681 = vmatprep.subr.mxu0 0.0
    %682 = vmatpush2.xpose.msra.mxu0 0.0
    %683 = vmatprep.subr.mxu0 0.0
    %684 = vmatpush2.xpose.msra.mxu0 0.0
    %685 = vmatprep.subr.mxu0 0.0
    %686 = vmatpush2.xpose.msra.mxu0 0.0
    %687 = vmatprep.subr.mxu0 0.0
    %688 = vmatpush2.xpose.msra.mxu0 0.0
    %689 = vmatprep.subr.mxu0 0.0
    %690 = vmatpush2.xpose.msra.mxu0 0.0
    %691 = vmatprep.subr.mxu0 0.0
    %692 = vmatpush2.xpose.msra.mxu0 0.0
    %693 = vmatprep.subr.mxu0 0.0
    %694 = vmatpush2.xpose.msra.mxu0 0.0
    %695 = vmatprep.subr.mxu0 0.0
    %696 = vmatpush2.xpose.msra.mxu0 0.0
    %697 = vmatprep.subr.mxu0 0.0
    %698 = vmatpush2.xpose.msra.mxu0 0.0
    %699 = vmatprep.subr.mxu0 0.0
    %700 = vmatpush2.xpose.msra.mxu0 0.0
    %701 = vmatprep.mubr.f32.mxu0 0.0
    %702 = vmatmul.mubr.f32.gmra.mxu0 %v629
    %v703 = vpop.f32.mrf.mxu0
    %v704 = vadd.f32 0.0, %v703
    %v705 = vpop.f32.mrf.mxu0
    %706 = vmatprep.mubr.f32.mxu0 0.0
    %707 = vmatmul.mubr.f32.gmra.mxu0 %v631
    %v708 = vpop.f32.mrf.mxu0
    %v709 = vadd.f32 0.0, %v708
    %v710 = vpop.f32.mrf.mxu0
    %711 = vdwg.mxu0
    %v712 = vmul.f32 %v704, 0.35355338
    %v713 = vmul.f32 %v709, 0.35355338
    %v714 = vadd.f32 %v712, %v211
    %v715 = vadd.f32 %v713, %v212
    %v716 = vsel %vm307, %v714, -inf
    %717 = vmax.xlane.f32.xlu0 %v716
    %v718 = vpop.xlane.xlu0 %717
    %v719 = vsel %vm307, %v715, -inf
    %720 = vmax.xlane.f32.xlu0 %v719
    %v721 = vpop.xlane.xlu0 %720
    %v722 = vsub.f32 %v714, %v718
    %v723 = vsub.f32 %v715, %v721
    %v724 = vmul.f32 %v722, 1.442695
    %v725 = vpow.pop %v724
    %v726 = vmul.f32 %v723, 1.442695
    %v727 = vpow.pop %v726
    %v728 = vsel %vm307, %v725, 0.0
    %729 = vadd.xlane.f32.xlu0 %v728
    %v730 = vpop.xlane.xlu0 %729
    %v731 = vsel %vm307, %v727, 0.0
    %732 = vadd.xlane.f32.xlu0 %v731
    %v733 = vpop.xlane.xlu0 %732
    %v734 = vrcp.pop %v730
    %v735 = vrcp.pop %v733
    %v736 = vmul.f32 %v725, %v734
    %v737 = vmul.f32 %v727, %v735
    %738 = vrot.lane.b32.xlu0 %v201, 16
    %v739 = vpop.permute.xlu0 %738
    %740 = vrot.lane.b32.xlu0 %v207, 16
    %v741 = vpop.permute.xlu0 %740
    %v745 = vsel %vm307, %v736, 0
    %v748 = vsel %vm307, %v737, 0
    %750 = vmatprep.subr.mxu0 0.0
    %751 = vmatpush1.msra.mxu0 0.0
    %752 = vmatprep.subr.mxu0 0.0
    %753 = vmatpush1.msra.mxu0 0.0
    %754 = vmatprep.subr.mxu0 0.0
    %755 = vmatpush1.msra.mxu0 0.0
    %756 = vmatprep.subr.mxu0 0.0
    %757 = vmatpush1.msra.mxu0 0.0
    %758 = vmatprep.subr.mxu0 0.0
    %759 = vmatpush1.msra.mxu0 0.0
    %760 = vmatprep.subr.mxu0 0.0
    %761 = vmatpush1.msra.mxu0 0.0
    %762 = vmatprep.subr.mxu0 0.0
    %763 = vmatpush1.msra.mxu0 0.0
    %764 = vmatprep.subr.mxu0 0.0
    %765 = vmatpush1.msra.mxu0 0.0
    %766 = vmatprep.subr.mxu0 0.0
    %767 = vmatpush1.msra.mxu0 0.0
    %768 = vmatprep.subr.mxu0 0.0
    %769 = vmatpush1.msra.mxu0 0.0
    %770 = vmatprep.subr.mxu0 0.0
    %771 = vmatpush1.msra.mxu0 0.0
    %772 = vmatprep.subr.mxu0 0.0
    %773 = vmatpush1.msra.mxu0 0.0
    %774 = vmatprep.subr.mxu0 0.0
    %775 = vmatpush1.msra.mxu0 0.0
    %776 = vmatprep.subr.mxu0 0.0
    %777 = vmatpush1.msra.mxu0 0.0
    %778 = vmatprep.subr.mxu0 0.0
    %779 = vmatpush1.msra.mxu0 %v741
    %780 = vmatprep.subr.mxu0 0.0
    %781 = vmatpush1.msra.mxu0 %v739
    %782 = vmatprep.subr.mxu0 0.0
    %783 = vmatpush2.msra.mxu0 0.0
    %784 = vmatprep.subr.mxu0 0.0
    %785 = vmatpush2.msra.mxu0 0.0
    %786 = vmatprep.subr.mxu0 0.0
    %787 = vmatpush2.msra.mxu0 0.0
    %788 = vmatprep.subr.mxu0 0.0
    %789 = vmatpush2.msra.mxu0 0.0
    %790 = vmatprep.subr.mxu0 0.0
    %791 = vmatpush2.msra.mxu0 0.0
    %792 = vmatprep.subr.mxu0 0.0
    %793 = vmatpush2.msra.mxu0 0.0
    %794 = vmatprep.subr.mxu0 0.0
    %795 = vmatpush2.msra.mxu0 0.0
    %796 = vmatprep.subr.mxu0 0.0
    %797 = vmatpush2.msra.mxu0 0.0
    %798 = vmatprep.subr.mxu0 0.0
    %799 = vmatpush2.msra.mxu0 0.0
    %800 = vmatprep.subr.mxu0 0.0
    %801 = vmatpush2.msra.mxu0 0.0
    %802 = vmatprep.subr.mxu0 0.0
    %803 = vmatpush2.msra.mxu0 0.0
    %804 = vmatprep.subr.mxu0 0.0
    %805 = vmatpush2.msra.mxu0 0.0
    %806 = vmatprep.subr.mxu0 0.0
    %807 = vmatpush2.msra.mxu0 0.0
    %808 = vmatprep.subr.mxu0 0.0
    %809 = vmatpush2.msra.mxu0 0.0
    %810 = vmatprep.subr.mxu0 0.0
    %811 = vmatpush2.msra.mxu0 0.0
    %812 = vmatprep.subr.mxu0 0.0
    %813 = vmatpush2.msra.mxu0 0.0
    %814 = vmatprep.mubr.f32.mxu0 0.0
    %815 = vmatmul.mubr.f32.gmra.mxu0 %v745
    %v816 = vpop.f32.mrf.mxu0
    %v817 = vadd.f32 0.0, %v816
    %v818 = vpop.f32.mrf.mxu0
    %819 = vmatprep.mubr.f32.mxu0 0.0
    %820 = vmatmul.mubr.f32.gmra.mxu0 %v748
    %v821 = vpop.f32.mrf.mxu0
    %v822 = vadd.f32 0.0, %v821
    %v823 = vpop.f32.mrf.mxu0
    %824 = vdwg.mxu0
    %825 = vrot.lane.b32.xlu0 %v201, 104
    %v826 = vpop.permute.xlu0 %825
    %827 = vrot.lane.b32.xlu0 %v207, 104
    %v828 = vpop.permute.xlu0 %827
    %829 = vrot.lane.b32.xlu0 %v201, 56
    %v830 = vpop.permute.xlu0 %829
    %831 = vrot.lane.b32.xlu0 %v207, 56
    %v832 = vpop.permute.xlu0 %831
    %v833 = vsel %vm219, %v826, 0
    %v835 = vsel %vm219, %v828, 0
    %v837 = vsel %vm219, %v830, 0
    %v839 = vsel %vm219, %v832, 0
    %841 = vmatprep.subr.mxu0 0.0
    %842 = vmatpush1.xpose.msra.mxu0 0.0
    %843 = vmatprep.subr.mxu0 0.0
    %844 = vmatpush1.xpose.msra.mxu0 0.0
    %845 = vmatprep.subr.mxu0 0.0
    %846 = vmatpush1.xpose.msra.mxu0 0.0
    %847 = vmatprep.subr.mxu0 0.0
    %848 = vmatpush1.xpose.msra.mxu0 0.0
    %849 = vmatprep.subr.mxu0 0.0
    %850 = vmatpush1.xpose.msra.mxu0 0.0
    %851 = vmatprep.subr.mxu0 0.0
    %852 = vmatpush1.xpose.msra.mxu0 0.0
    %853 = vmatprep.subr.mxu0 0.0
    %854 = vmatpush1.xpose.msra.mxu0 0.0
    %855 = vmatprep.subr.mxu0 0.0
    %856 = vmatpush1.xpose.msra.mxu0 0.0
    %857 = vmatprep.subr.mxu0 0.0
    %858 = vmatpush1.xpose.msra.mxu0 0.0
    %859 = vmatprep.subr.mxu0 0.0
    %860 = vmatpush1.xpose.msra.mxu0 0.0
    %861 = vmatprep.subr.mxu0 0.0
    %862 = vmatpush1.xpose.msra.mxu0 0.0
    %863 = vmatprep.subr.mxu0 0.0
    %864 = vmatpush1.xpose.msra.mxu0 0.0
    %865 = vmatprep.subr.mxu0 0.0
    %866 = vmatpush1.xpose.msra.mxu0 0.0
    %867 = vmatprep.subr.mxu0 0.0
    %868 = vmatpush1.xpose.msra.mxu0 0.0
    %869 = vmatprep.subr.mxu0 0.0
    %870 = vmatpush1.xpose.msra.mxu0 %v839
    %871 = vmatprep.subr.mxu0 0.0
    %872 = vmatpush1.xpose.msra.mxu0 %v837
    %873 = vmatprep.subr.mxu0 0.0
    %874 = vmatpush2.xpose.msra.mxu0 0.0
    %875 = vmatprep.subr.mxu0 0.0
    %876 = vmatpush2.xpose.msra.mxu0 0.0
    %877 = vmatprep.subr.mxu0 0.0
    %878 = vmatpush2.xpose.msra.mxu0 0.0
    %879 = vmatprep.subr.mxu0 0.0
    %880 = vmatpush2.xpose.msra.mxu0 0.0
    %881 = vmatprep.subr.mxu0 0.0
    %882 = vmatpush2.xpose.msra.mxu0 0.0
    %883 = vmatprep.subr.mxu0 0.0
    %884 = vmatpush2.xpose.msra.mxu0 0.0
    %885 = vmatprep.subr.mxu0 0.0
    %886 = vmatpush2.xpose.msra.mxu0 0.0
    %887 = vmatprep.subr.mxu0 0.0
    %888 = vmatpush2.xpose.msra.mxu0 0.0
    %889 = vmatprep.subr.mxu0 0.0
    %890 = vmatpush2.xpose.msra.mxu0 0.0
    %891 = vmatprep.subr.mxu0 0.0
    %892 = vmatpush2.xpose.msra.mxu0 0.0
    %893 = vmatprep.subr.mxu0 0.0
    %894 = vmatpush2.xpose.msra.mxu0 0.0
    %895 = vmatprep.subr.mxu0 0.0
    %896 = vmatpush2.xpose.msra.mxu0 0.0
    %897 = vmatprep.subr.mxu0 0.0
    %898 = vmatpush2.xpose.msra.mxu0 0.0
    %899 = vmatprep.subr.mxu0 0.0
    %900 = vmatpush2.xpose.msra.mxu0 0.0
    %901 = vmatprep.subr.mxu0 0.0
    %902 = vmatpush2.xpose.msra.mxu0 0.0
    %903 = vmatprep.subr.mxu0 0.0
    %904 = vmatpush2.xpose.msra.mxu0 0.0
    %905 = vmatprep.mubr.f32.mxu0 0.0
    %906 = vmatmul.mubr.f32.gmra.mxu0 %v833
    %v907 = vpop.f32.mrf.mxu0
    %v908 = vadd.f32 0.0, %v907
    %v909 = vpop.f32.mrf.mxu0
    %910 = vmatprep.mubr.f32.mxu0 0.0
    %911 = vmatmul.mubr.f32.gmra.mxu0 %v835
    %v912 = vpop.f32.mrf.mxu0
    %v913 = vadd.f32 0.0, %v912
    %v914 = vpop.f32.mrf.mxu0
    %915 = vdwg.mxu0
    %v916 = vmul.f32 %v908, 0.35355338
    %v917 = vmul.f32 %v913, 0.35355338
    %v918 = vadd.f32 %v916, %v211
    %v919 = vadd.f32 %v917, %v212
    %v920 = vsel %vm307, %v918, -inf
    %921 = vmax.xlane.f32.xlu0 %v920
    %v922 = vpop.xlane.xlu0 %921
    %v923 = vsel %vm307, %v919, -inf
    %924 = vmax.xlane.f32.xlu0 %v923
    %v925 = vpop.xlane.xlu0 %924
    %v926 = vsub.f32 %v918, %v922
    %v927 = vsub.f32 %v919, %v925
    %v928 = vmul.f32 %v926, 1.442695
    %v929 = vpow.pop %v928
    %v930 = vmul.f32 %v927, 1.442695
    %v931 = vpow.pop %v930
    %v932 = vsel %vm307, %v929, 0.0
    %933 = vadd.xlane.f32.xlu0 %v932
    %v934 = vpop.xlane.xlu0 %933
    %v935 = vsel %vm307, %v931, 0.0
    %936 = vadd.xlane.f32.xlu0 %v935
    %v937 = vpop.xlane.xlu0 %936
    %v938 = vrcp.pop %v934
    %v939 = vrcp.pop %v937
    %v940 = vmul.f32 %v929, %v938
    %v941 = vmul.f32 %v931, %v939
    %942 = vrot.lane.b32.xlu0 %v201, 8
    %v943 = vpop.permute.xlu0 %942
    %944 = vrot.lane.b32.xlu0 %v207, 8
    %v945 = vpop.permute.xlu0 %944
    %v949 = vsel %vm307, %v940, 0
    %v952 = vsel %vm307, %v941, 0
    %954 = vmatprep.subr.mxu0 0.0
    %955 = vmatpush1.msra.mxu0 0.0
    %956 = vmatprep.subr.mxu0 0.0
    %957 = vmatpush1.msra.mxu0 0.0
    %958 = vmatprep.subr.mxu0 0.0
    %959 = vmatpush1.msra.mxu0 0.0
    %960 = vmatprep.subr.mxu0 0.0
    %961 = vmatpush1.msra.mxu0 0.0
    %962 = vmatprep.subr.mxu0 0.0
    %963 = vmatpush1.msra.mxu0 0.0
    %964 = vmatprep.subr.mxu0 0.0
    %965 = vmatpush1.msra.mxu0 0.0
    %966 = vmatprep.subr.mxu0 0.0
    %967 = vmatpush1.msra.mxu0 0.0
    %968 = vmatprep.subr.mxu0 0.0
    %969 = vmatpush1.msra.mxu0 0.0
    %970 = vmatprep.subr.mxu0 0.0
    %971 = vmatpush1.msra.mxu0 0.0
    %972 = vmatprep.subr.mxu0 0.0
    %973 = vmatpush1.msra.mxu0 0.0
    %974 = vmatprep.subr.mxu0 0.0
    %975 = vmatpush1.msra.mxu0 0.0
    %976 = vmatprep.subr.mxu0 0.0
    %977 = vmatpush1.msra.mxu0 0.0
    %978 = vmatprep.subr.mxu0 0.0
    %979 = vmatpush1.msra.mxu0 0.0
    %980 = vmatprep.subr.mxu0 0.0
    %981 = vmatpush1.msra.mxu0 0.0
    %982 = vmatprep.subr.mxu0 0.0
    %983 = vmatpush1.msra.mxu0 %v945
    %984 = vmatprep.subr.mxu0 0.0
    %985 = vmatpush1.msra.mxu0 %v943
    %986 = vmatprep.subr.mxu0 0.0
    %987 = vmatpush2.msra.mxu0 0.0
    %988 = vmatprep.subr.mxu0 0.0
    %989 = vmatpush2.msra.mxu0 0.0
    %990 = vmatprep.subr.mxu0 0.0
    %991 = vmatpush2.msra.mxu0 0.0
    %992 = vmatprep.subr.mxu0 0.0
    %993 = vmatpush2.msra.mxu0 0.0
    %994 = vmatprep.subr.mxu0 0.0
    %995 = vmatpush2.msra.mxu0 0.0
    %996 = vmatprep.subr.mxu0 0.0
    %997 = vmatpush2.msra.mxu0 0.0
    %998 = vmatprep.subr.mxu0 0.0
    %999 = vmatpush2.msra.mxu0 0.0
    %1000 = vmatprep.subr.mxu0 0.0
    %1001 = vmatpush2.msra.mxu0 0.0
    %1002 = vmatprep.subr.mxu0 0.0
    %1003 = vmatpush2.msra.mxu0 0.0
    %1004 = vmatprep.subr.mxu0 0.0
    %1005 = vmatpush2.msra.mxu0 0.0
    %1006 = vmatprep.subr.mxu0 0.0
    %1007 = vmatpush2.msra.mxu0 0.0
    %1008 = vmatprep.subr.mxu0 0.0
    %1009 = vmatpush2.msra.mxu0 0.0
    %1010 = vmatprep.subr.mxu0 0.0
    %1011 = vmatpush2.msra.mxu0 0.0
    %1012 = vmatprep.subr.mxu0 0.0
    %1013 = vmatpush2.msra.mxu0 0.0
    %1014 = vmatprep.subr.mxu0 0.0
    %1015 = vmatpush2.msra.mxu0 0.0
    %1016 = vmatprep.subr.mxu0 0.0
    %1017 = vmatpush2.msra.mxu0 0.0
    %1018 = vmatprep.mubr.f32.mxu0 0.0
    %1019 = vmatmul.mubr.f32.gmra.mxu0 %v949
    %v1020 = vpop.f32.mrf.mxu0
    %v1021 = vadd.f32 0.0, %v1020
    %v1022 = vpop.f32.mrf.mxu0
    %1023 = vmatprep.mubr.f32.mxu0 0.0
    %1024 = vmatmul.mubr.f32.gmra.mxu0 %v952
    %v1025 = vpop.f32.mrf.mxu0
    %v1026 = vadd.f32 0.0, %v1025
    %v1027 = vpop.f32.mrf.mxu0
    %1028 = vdwg.mxu0
    %1029 = vrot.lane.b32.xlu0 %v201, 96
    %v1030 = vpop.permute.xlu0 %1029
    %1031 = vrot.lane.b32.xlu0 %v207, 96
    %v1032 = vpop.permute.xlu0 %1031
    %1033 = vrot.lane.b32.xlu0 %v201, 48
    %v1034 = vpop.permute.xlu0 %1033
    %1035 = vrot.lane.b32.xlu0 %v207, 48
    %v1036 = vpop.permute.xlu0 %1035
    %v1037 = vsel %vm219, %v1030, 0
    %v1039 = vsel %vm219, %v1032, 0
    %v1041 = vsel %vm219, %v1034, 0
    %v1043 = vsel %vm219, %v1036, 0
    %1045 = vmatprep.subr.mxu0 0.0
    %1046 = vmatpush1.xpose.msra.mxu0 0.0
    %1047 = vmatprep.subr.mxu0 0.0
    %1048 = vmatpush1.xpose.msra.mxu0 0.0
    %1049 = vmatprep.subr.mxu0 0.0
    %1050 = vmatpush1.xpose.msra.mxu0 0.0
    %1051 = vmatprep.subr.mxu0 0.0
    %1052 = vmatpush1.xpose.msra.mxu0 0.0
    %1053 = vmatprep.subr.mxu0 0.0
    %1054 = vmatpush1.xpose.msra.mxu0 0.0
    %1055 = vmatprep.subr.mxu0 0.0
    %1056 = vmatpush1.xpose.msra.mxu0 0.0
    %1057 = vmatprep.subr.mxu0 0.0
    %1058 = vmatpush1.xpose.msra.mxu0 0.0
    %1059 = vmatprep.subr.mxu0 0.0
    %1060 = vmatpush1.xpose.msra.mxu0 0.0
    %1061 = vmatprep.subr.mxu0 0.0
    %1062 = vmatpush1.xpose.msra.mxu0 0.0
    %1063 = vmatprep.subr.mxu0 0.0
    %1064 = vmatpush1.xpose.msra.mxu0 0.0
    %1065 = vmatprep.subr.mxu0 0.0
    %1066 = vmatpush1.xpose.msra.mxu0 0.0
    %1067 = vmatprep.subr.mxu0 0.0
    %1068 = vmatpush1.xpose.msra.mxu0 0.0
    %1069 = vmatprep.subr.mxu0 0.0
    %1070 = vmatpush1.xpose.msra.mxu0 0.0
    %1071 = vmatprep.subr.mxu0 0.0
    %1072 = vmatpush1.xpose.msra.mxu0 0.0
    %1073 = vmatprep.subr.mxu0 0.0
    %1074 = vmatpush1.xpose.msra.mxu0 %v1043
    %1075 = vmatprep.subr.mxu0 0.0
    %1076 = vmatpush1.xpose.msra.mxu0 %v1041
    %1077 = vmatprep.subr.mxu0 0.0
    %1078 = vmatpush2.xpose.msra.mxu0 0.0
    %1079 = vmatprep.subr.mxu0 0.0
    %1080 = vmatpush2.xpose.msra.mxu0 0.0
    %1081 = vmatprep.subr.mxu0 0.0
    %1082 = vmatpush2.xpose.msra.mxu0 0.0
    %1083 = vmatprep.subr.mxu0 0.0
    %1084 = vmatpush2.xpose.msra.mxu0 0.0
    %1085 = vmatprep.subr.mxu0 0.0
    %1086 = vmatpush2.xpose.msra.mxu0 0.0
    %1087 = vmatprep.subr.mxu0 0.0
    %1088 = vmatpush2.xpose.msra.mxu0 0.0
    %1089 = vmatprep.subr.mxu0 0.0
    %1090 = vmatpush2.xpose.msra.mxu0 0.0
    %1091 = vmatprep.subr.mxu0 0.0
    %1092 = vmatpush2.xpose.msra.mxu0 0.0
    %1093 = vmatprep.subr.mxu0 0.0
    %1094 = vmatpush2.xpose.msra.mxu0 0.0
    %1095 = vmatprep.subr.mxu0 0.0
    %1096 = vmatpush2.xpose.msra.mxu0 0.0
    %1097 = vmatprep.subr.mxu0 0.0
    %1098 = vmatpush2.xpose.msra.mxu0 0.0
    %1099 = vmatprep.subr.mxu0 0.0
    %1100 = vmatpush2.xpose.msra.mxu0 0.0
    %1101 = vmatprep.subr.mxu0 0.0
    %1102 = vmatpush2.xpose.msra.mxu0 0.0
    %1103 = vmatprep.subr.mxu0 0.0
    %1104 = vmatpush2.xpose.msra.mxu0 0.0
    %1105 = vmatprep.subr.mxu0 0.0
    %1106 = vmatpush2.xpose.msra.mxu0 0.0
    %1107 = vmatprep.subr.mxu0 0.0
    %1108 = vmatpush2.xpose.msra.mxu0 0.0
    %1109 = vmatprep.mubr.f32.mxu0 0.0
    %1110 = vmatmul.mubr.f32.gmra.mxu0 %v1037
    %v1111 = vpop.f32.mrf.mxu0
    %v1112 = vadd.f32 0.0, %v1111
    %v1113 = vpop.f32.mrf.mxu0
    %1114 = vmatprep.mubr.f32.mxu0 0.0
    %1115 = vmatmul.mubr.f32.gmra.mxu0 %v1039
    %v1116 = vpop.f32.mrf.mxu0
    %v1117 = vadd.f32 0.0, %v1116
    %v1118 = vpop.f32.mrf.mxu0
    %1119 = vdwg.mxu0
    %v1120 = vmul.f32 %v1112, 0.35355338
    %v1121 = vmul.f32 %v1117, 0.35355338
    %v1122 = vadd.f32 %v1120, %v211
    %v1123 = vadd.f32 %v1121, %v212
    %v1124 = vsel %vm307, %v1122, -inf
    %1125 = vmax.xlane.f32.xlu0 %v1124
    %v1126 = vpop.xlane.xlu0 %1125
    %v1127 = vsel %vm307, %v1123, -inf
    %1128 = vmax.xlane.f32.xlu0 %v1127
    %v1129 = vpop.xlane.xlu0 %1128
    %v1130 = vsub.f32 %v1122, %v1126
    %v1131 = vsub.f32 %v1123, %v1129
    %v1132 = vmul.f32 %v1130, 1.442695
    %v1133 = vpow.pop %v1132
    %v1134 = vmul.f32 %v1131, 1.442695
    %v1135 = vpow.pop %v1134
    %v1136 = vsel %vm307, %v1133, 0.0
    %1137 = vadd.xlane.f32.xlu0 %v1136
    %v1138 = vpop.xlane.xlu0 %1137
    %v1139 = vsel %vm307, %v1135, 0.0
    %1140 = vadd.xlane.f32.xlu0 %v1139
    %v1141 = vpop.xlane.xlu0 %1140
    %v1142 = vrcp.pop %v1138
    %v1143 = vrcp.pop %v1141
    %v1144 = vmul.f32 %v1133, %v1142
    %v1145 = vmul.f32 %v1135, %v1143
    %v1147 = vsel %vm307, %v1144, 0
    %v1150 = vsel %vm307, %v1145, 0
    %1152 = vmatprep.subr.mxu0 0.0
    %1153 = vmatpush1.msra.mxu0 0.0
    %1154 = vmatprep.subr.mxu0 0.0
    %1155 = vmatpush1.msra.mxu0 0.0
    %1156 = vmatprep.subr.mxu0 0.0
    %1157 = vmatpush1.msra.mxu0 0.0
    %1158 = vmatprep.subr.mxu0 0.0
    %1159 = vmatpush1.msra.mxu0 0.0
    %1160 = vmatprep.subr.mxu0 0.0
    %1161 = vmatpush1.msra.mxu0 0.0
    %1162 = vmatprep.subr.mxu0 0.0
    %1163 = vmatpush1.msra.mxu0 0.0
    %1164 = vmatprep.subr.mxu0 0.0
    %1165 = vmatpush1.msra.mxu0 0.0
    %1166 = vmatprep.subr.mxu0 0.0
    %1167 = vmatpush1.msra.mxu0 0.0
    %1168 = vmatprep.subr.mxu0 0.0
    %1169 = vmatpush1.msra.mxu0 0.0
    %1170 = vmatprep.subr.mxu0 0.0
    %1171 = vmatpush1.msra.mxu0 0.0
    %1172 = vmatprep.subr.mxu0 0.0
    %1173 = vmatpush1.msra.mxu0 0.0
    %1174 = vmatprep.subr.mxu0 0.0
    %1175 = vmatpush1.msra.mxu0 0.0
    %1176 = vmatprep.subr.mxu0 0.0
    %1177 = vmatpush1.msra.mxu0 0.0
    %1178 = vmatprep.subr.mxu0 0.0
    %1179 = vmatpush1.msra.mxu0 0.0
    %1180 = vmatprep.subr.mxu0 0.0
    %1181 = vmatpush1.msra.mxu0 %v209
    %1182 = vmatprep.subr.mxu0 0.0
    %1183 = vmatpush1.msra.mxu0 %v203
    %1184 = vmatprep.subr.mxu0 0.0
    %1185 = vmatpush2.msra.mxu0 0.0
    %1186 = vmatprep.subr.mxu0 0.0
    %1187 = vmatpush2.msra.mxu0 0.0
    %1188 = vmatprep.subr.mxu0 0.0
    %1189 = vmatpush2.msra.mxu0 0.0
    %1190 = vmatprep.subr.mxu0 0.0
    %1191 = vmatpush2.msra.mxu0 0.0
    %1192 = vmatprep.subr.mxu0 0.0
    %1193 = vmatpush2.msra.mxu0 0.0
    %1194 = vmatprep.subr.mxu0 0.0
    %1195 = vmatpush2.msra.mxu0 0.0
    %1196 = vmatprep.subr.mxu0 0.0
    %1197 = vmatpush2.msra.mxu0 0.0
    %1198 = vmatprep.subr.mxu0 0.0
    %1199 = vmatpush2.msra.mxu0 0.0
    %1200 = vmatprep.subr.mxu0 0.0
    %1201 = vmatpush2.msra.mxu0 0.0
    %1202 = vmatprep.subr.mxu0 0.0
    %1203 = vmatpush2.msra.mxu0 0.0
    %1204 = vmatprep.subr.mxu0 0.0
    %1205 = vmatpush2.msra.mxu0 0.0
    %1206 = vmatprep.subr.mxu0 0.0
    %1207 = vmatpush2.msra.mxu0 0.0
    %1208 = vmatprep.subr.mxu0 0.0
    %1209 = vmatpush2.msra.mxu0 0.0
    %1210 = vmatprep.subr.mxu0 0.0
    %1211 = vmatpush2.msra.mxu0 0.0
    %1212 = vmatprep.subr.mxu0 0.0
    %1213 = vmatpush2.msra.mxu0 0.0
    %1214 = vmatprep.subr.mxu0 0.0
    %1215 = vmatpush2.msra.mxu0 0.0
    %1216 = vmatprep.mubr.f32.mxu0 0.0
    %1217 = vmatmul.mubr.f32.gmra.mxu0 %v1147
    %v1218 = vpop.f32.mrf.mxu0
    %v1219 = vadd.f32 0.0, %v1218
    %v1220 = vpop.f32.mrf.mxu0
    %1221 = vmatprep.mubr.f32.mxu0 0.0
    %1222 = vmatmul.mubr.f32.gmra.mxu0 %v1150
    %v1223 = vpop.f32.mrf.mxu0
    %v1224 = vadd.f32 0.0, %v1223
    %v1225 = vpop.f32.mrf.mxu0
    %1226 = vdwg.mxu0
    %1227 = vrot.lane.b32.xlu0 %v201, 88
    %v1228 = vpop.permute.xlu0 %1227
    %1229 = vrot.lane.b32.xlu0 %v207, 88
    %v1230 = vpop.permute.xlu0 %1229
    %1231 = vrot.lane.b32.xlu0 %v201, 40
    %v1232 = vpop.permute.xlu0 %1231
    %1233 = vrot.lane.b32.xlu0 %v207, 40
    %v1234 = vpop.permute.xlu0 %1233
    %v1235 = vsel %vm219, %v1228, 0
    %v1237 = vsel %vm219, %v1230, 0
    %v1239 = vsel %vm219, %v1232, 0
    %v1241 = vsel %vm219, %v1234, 0
    %1243 = vmatprep.subr.mxu0 0.0
    %1244 = vmatpush1.xpose.msra.mxu0 0.0
    %1245 = vmatprep.subr.mxu0 0.0
    %1246 = vmatpush1.xpose.msra.mxu0 0.0
    %1247 = vmatprep.subr.mxu0 0.0
    %1248 = vmatpush1.xpose.msra.mxu0 0.0
    %1249 = vmatprep.subr.mxu0 0.0
    %1250 = vmatpush1.xpose.msra.mxu0 0.0
    %1251 = vmatprep.subr.mxu0 0.0
    %1252 = vmatpush1.xpose.msra.mxu0 0.0
    %1253 = vmatprep.subr.mxu0 0.0
    %1254 = vmatpush1.xpose.msra.mxu0 0.0
    %1255 = vmatprep.subr.mxu0 0.0
    %1256 = vmatpush1.xpose.msra.mxu0 0.0
    %1257 = vmatprep.subr.mxu0 0.0
    %1258 = vmatpush1.xpose.msra.mxu0 0.0
    %1259 = vmatprep.subr.mxu0 0.0
    %1260 = vmatpush1.xpose.msra.mxu0 0.0
    %1261 = vmatprep.subr.mxu0 0.0
    %1262 = vmatpush1.xpose.msra.mxu0 0.0
    %1263 = vmatprep.subr.mxu0 0.0
    %1264 = vmatpush1.xpose.msra.mxu0 0.0
    %1265 = vmatprep.subr.mxu0 0.0
    %1266 = vmatpush1.xpose.msra.mxu0 0.0
    %1267 = vmatprep.subr.mxu0 0.0
    %1268 = vmatpush1.xpose.msra.mxu0 0.0
    %1269 = vmatprep.subr.mxu0 0.0
    %1270 = vmatpush1.xpose.msra.mxu0 0.0
    %1271 = vmatprep.subr.mxu0 0.0
    %1272 = vmatpush1.xpose.msra.mxu0 %v1241
    %1273 = vmatprep.subr.mxu0 0.0
    %1274 = vmatpush1.xpose.msra.mxu0 %v1239
    %1275 = vmatprep.subr.mxu0 0.0
    %1276 = vmatpush2.xpose.msra.mxu0 0.0
    %1277 = vmatprep.subr.mxu0 0.0
    %1278 = vmatpush2.xpose.msra.mxu0 0.0
    %1279 = vmatprep.subr.mxu0 0.0
    %1280 = vmatpush2.xpose.msra.mxu0 0.0
    %1281 = vmatprep.subr.mxu0 0.0
    %1282 = vmatpush2.xpose.msra.mxu0 0.0
    %1283 = vmatprep.subr.mxu0 0.0
    %1284 = vmatpush2.xpose.msra.mxu0 0.0
    %1285 = vmatprep.subr.mxu0 0.0
    %1286 = vmatpush2.xpose.msra.mxu0 0.0
    %1287 = vmatprep.subr.mxu0 0.0
    %1288 = vmatpush2.xpose.msra.mxu0 0.0
    %1289 = vmatprep.subr.mxu0 0.0
    %1290 = vmatpush2.xpose.msra.mxu0 0.0
    %1291 = vmatprep.subr.mxu0 0.0
    %1292 = vmatpush2.xpose.msra.mxu0 0.0
    %1293 = vmatprep.subr.mxu0 0.0
    %1294 = vmatpush2.xpose.msra.mxu0 0.0
    %1295 = vmatprep.subr.mxu0 0.0
    %1296 = vmatpush2.xpose.msra.mxu0 0.0
    %1297 = vmatprep.subr.mxu0 0.0
    %1298 = vmatpush2.xpose.msra.mxu0 0.0
    %1299 = vmatprep.subr.mxu0 0.0
    %1300 = vmatpush2.xpose.msra.mxu0 0.0
    %1301 = vmatprep.subr.mxu0 0.0
    %1302 = vmatpush2.xpose.msra.mxu0 0.0
    %1303 = vmatprep.subr.mxu0 0.0
    %1304 = vmatpush2.xpose.msra.mxu0 0.0
    %1305 = vmatprep.subr.mxu0 0.0
    %1306 = vmatpush2.xpose.msra.mxu0 0.0
    %1307 = vmatprep.mubr.f32.mxu0 0.0
    %1308 = vmatmul.mubr.f32.gmra.mxu0 %v1235
    %v1309 = vpop.f32.mrf.mxu0
    %v1310 = vadd.f32 0.0, %v1309
    %v1311 = vpop.f32.mrf.mxu0
    %1312 = vmatprep.mubr.f32.mxu0 0.0
    %1313 = vmatmul.mubr.f32.gmra.mxu0 %v1237
    %v1314 = vpop.f32.mrf.mxu0
    %v1315 = vadd.f32 0.0, %v1314
    %v1316 = vpop.f32.mrf.mxu0
    %1317 = vdwg.mxu0
    %v1318 = vmul.f32 %v1310, 0.35355338
    %v1319 = vmul.f32 %v1315, 0.35355338
    %v1320 = vadd.f32 %v1318, %v211
    %v1321 = vadd.f32 %v1319, %v212
    %v1322 = vsel %vm307, %v1320, -inf
    %1323 = vmax.xlane.f32.xlu0 %v1322
    %v1324 = vpop.xlane.xlu0 %1323
    %v1325 = vsel %vm307, %v1321, -inf
    %1326 = vmax.xlane.f32.xlu0 %v1325
    %v1327 = vpop.xlane.xlu0 %1326
    %v1328 = vsub.f32 %v1320, %v1324
    %v1329 = vsub.f32 %v1321, %v1327
    %v1330 = vmul.f32 %v1328, 1.442695
    %v1331 = vpow.pop %v1330
    %v1332 = vmul.f32 %v1329, 1.442695
    %v1333 = vpow.pop %v1332
    %v1334 = vsel %vm307, %v1331, 0.0
    %1335 = vadd.xlane.f32.xlu0 %v1334
    %v1336 = vpop.xlane.xlu0 %1335
    %v1337 = vsel %vm307, %v1333, 0.0
    %1338 = vadd.xlane.f32.xlu0 %v1337
    %v1339 = vpop.xlane.xlu0 %1338
    %v1340 = vrcp.pop %v1336
    %v1341 = vrcp.pop %v1339
    %v1342 = vmul.f32 %v1331, %v1340
    %v1343 = vmul.f32 %v1333, %v1341
    %1346 = vrot.lane.b32.xlu0 %v203, 120
    %v1347 = vpop.permute.xlu0 %1346
    %1348 = vrot.lane.b32.xlu0 %v209, 120
    %v1349 = vpop.permute.xlu0 %1348
    %v1353 = vsel %vm307, %v1342, 0
    %v1356 = vsel %vm307, %v1343, 0
    %1358 = vmatprep.subr.mxu0 0.0
    %1359 = vmatpush1.msra.mxu0 0.0
    %1360 = vmatprep.subr.mxu0 0.0
    %1361 = vmatpush1.msra.mxu0 0.0
    %1362 = vmatprep.subr.mxu0 0.0
    %1363 = vmatpush1.msra.mxu0 0.0
    %1364 = vmatprep.subr.mxu0 0.0
    %1365 = vmatpush1.msra.mxu0 0.0
    %1366 = vmatprep.subr.mxu0 0.0
    %1367 = vmatpush1.msra.mxu0 0.0
    %1368 = vmatprep.subr.mxu0 0.0
    %1369 = vmatpush1.msra.mxu0 0.0
    %1370 = vmatprep.subr.mxu0 0.0
    %1371 = vmatpush1.msra.mxu0 0.0
    %1372 = vmatprep.subr.mxu0 0.0
    %1373 = vmatpush1.msra.mxu0 0.0
    %1374 = vmatprep.subr.mxu0 0.0
    %1375 = vmatpush1.msra.mxu0 0.0
    %1376 = vmatprep.subr.mxu0 0.0
    %1377 = vmatpush1.msra.mxu0 0.0
    %1378 = vmatprep.subr.mxu0 0.0
    %1379 = vmatpush1.msra.mxu0 0.0
    %1380 = vmatprep.subr.mxu0 0.0
    %1381 = vmatpush1.msra.mxu0 0.0
    %1382 = vmatprep.subr.mxu0 0.0
    %1383 = vmatpush1.msra.mxu0 0.0
    %1384 = vmatprep.subr.mxu0 0.0
    %1385 = vmatpush1.msra.mxu0 0.0
    %1386 = vmatprep.subr.mxu0 0.0
    %1387 = vmatpush1.msra.mxu0 %v1349
    %1388 = vmatprep.subr.mxu0 0.0
    %1389 = vmatpush1.msra.mxu0 %v1347
    %1390 = vmatprep.subr.mxu0 0.0
    %1391 = vmatpush2.msra.mxu0 0.0
    %1392 = vmatprep.subr.mxu0 0.0
    %1393 = vmatpush2.msra.mxu0 0.0
    %1394 = vmatprep.subr.mxu0 0.0
    %1395 = vmatpush2.msra.mxu0 0.0
    %1396 = vmatprep.subr.mxu0 0.0
    %1397 = vmatpush2.msra.mxu0 0.0
    %1398 = vmatprep.subr.mxu0 0.0
    %1399 = vmatpush2.msra.mxu0 0.0
    %1400 = vmatprep.subr.mxu0 0.0
    %1401 = vmatpush2.msra.mxu0 0.0
    %1402 = vmatprep.subr.mxu0 0.0
    %1403 = vmatpush2.msra.mxu0 0.0
    %1404 = vmatprep.subr.mxu0 0.0
    %1405 = vmatpush2.msra.mxu0 0.0
    %1406 = vmatprep.subr.mxu0 0.0
    %1407 = vmatpush2.msra.mxu0 0.0
    %1408 = vmatprep.subr.mxu0 0.0
    %1409 = vmatpush2.msra.mxu0 0.0
    %1410 = vmatprep.subr.mxu0 0.0
    %1411 = vmatpush2.msra.mxu0 0.0
    %1412 = vmatprep.subr.mxu0 0.0
    %1413 = vmatpush2.msra.mxu0 0.0
    %1414 = vmatprep.subr.mxu0 0.0
    %1415 = vmatpush2.msra.mxu0 0.0
    %1416 = vmatprep.subr.mxu0 0.0
    %1417 = vmatpush2.msra.mxu0 0.0
    %1418 = vmatprep.subr.mxu0 0.0
    %1419 = vmatpush2.msra.mxu0 0.0
    %1420 = vmatprep.subr.mxu0 0.0
    %1421 = vmatpush2.msra.mxu0 0.0
    %1422 = vmatprep.mubr.f32.mxu0 0.0
    %1423 = vmatmul.mubr.f32.gmra.mxu0 %v1353
    %v1424 = vpop.f32.mrf.mxu0
    %v1425 = vadd.f32 0.0, %v1424
    %v1426 = vpop.f32.mrf.mxu0
    %1427 = vmatprep.mubr.f32.mxu0 0.0
    %1428 = vmatmul.mubr.f32.gmra.mxu0 %v1356
    %v1429 = vpop.f32.mrf.mxu0
    %v1430 = vadd.f32 0.0, %v1429
    %v1431 = vpop.f32.mrf.mxu0
    %1432 = vdwg.mxu0
    %1435 = vrot.lane.b32.xlu0 %v613, 8
    %v1436 = vpop.permute.xlu0 %1435
    %1437 = vrot.lane.b32.xlu0 %v618, 8
    %v1438 = vpop.permute.xlu0 %1437
    %1443 = vrot.lane.b32.xlu0 %v817, 16
    %v1444 = vpop.permute.xlu0 %1443
    %1445 = vrot.lane.b32.xlu0 %v822, 16
    %v1446 = vpop.permute.xlu0 %1445
    %1451 = vrot.lane.b32.xlu0 %v1021, 24
    %v1452 = vpop.permute.xlu0 %1451
    %1453 = vrot.lane.b32.xlu0 %v1026, 24
    %v1454 = vpop.permute.xlu0 %1453
    %1459 = vrot.lane.b32.xlu0 %v1219, 32
    %v1460 = vpop.permute.xlu0 %1459
    %1461 = vrot.lane.b32.xlu0 %v1224, 32
    %v1462 = vpop.permute.xlu0 %1461
    %1467 = vrot.lane.b32.xlu0 %v1425, 40
    %v1468 = vpop.permute.xlu0 %1467
    %1469 = vrot.lane.b32.xlu0 %v1430, 40
    %v1470 = vpop.permute.xlu0 %1469
    %v1473 = vsel %vm219, %v409, %v1436
    %v1474 = vsel %vm219, %v414, %v1438
    %v1475 = vsel %vm307, %v1473, %v1444
    %v1476 = vsel %vm307, %v1474, %v1446
    %vm1477 = vcmask 195584
    %v1478 = vsel %vm1477, %v1475, %v1452
    %v1479 = vsel %vm1477, %v1476, %v1454
    %vm1480 = vcmask 261120
    %v1481 = vsel %vm1480, %v1478, %v1460
    %v1482 = vsel %vm1480, %v1479, %v1462
    %vm1483 = vcmask 326656
    %v1484 = vsel %vm1483, %v1481, %v1468
    %v1485 = vsel %vm1483, %v1482, %v1470
    %v1486 = vld [vmem:[%s8] sm:$0x1]
    %v1487 = vld [vmem:[%s8 + $0x1] sm:$0x1]
    %v1488 = vld [vmem:[%s8 + $0x2] sm:$0x1]
    %v1489 = vld [vmem:[%s8 + $0x3] sm:$0x1]
    %v1490 = vld [vmem:[%s8 + $0x4] sm:$0x1]
    %v1491 = vld [vmem:[%s8 + $0x5] sm:$0x1]
    %v1492 = vld [vmem:[#allocation8] sm:$0xff]
    %v1493 = vld [vmem:[#allocation8 + $0x8] sm:$0xff]
    %v1494 = vld [vmem:[#allocation8 + $0x10] sm:$0xff]
    %v1495 = vld [vmem:[#allocation8 + $0x18] sm:$0xff]
    %v1496 = vld [vmem:[#allocation8 + $0x20] sm:$0xff]
    %v1497 = vld [vmem:[#allocation8 + $0x28] sm:$0xff]
    %v1498 = vlaneseq
    %v1499 = vshrl.u32 %v1498, 7
    %v1500 = vsub.s32 0, %v1499
    %v1501 = vrot.slane %v1486, %v1500
    %v1503 = vsel %vm127, %v1484, 0
    %v1506 = vsel %vm127, %v1485, 0
    %1508 = vmatprep.subr.mxu0 0.0
    %1509 = vmatpush1.msra.mxu0 0.0
    %1510 = vmatprep.subr.mxu0 0.0
    %1511 = vmatpush1.msra.mxu0 0.0
    %1512 = vmatprep.subr.mxu0 0.0
    %1513 = vmatpush1.msra.mxu0 0.0
    %1514 = vmatprep.subr.mxu0 0.0
    %1515 = vmatpush1.msra.mxu0 0.0
    %1516 = vmatprep.subr.mxu0 0.0
    %1517 = vmatpush1.msra.mxu0 0.0
    %1518 = vmatprep.subr.mxu0 0.0
    %1519 = vmatpush1.msra.mxu0 0.0
    %1520 = vmatprep.subr.mxu0 0.0
    %1521 = vmatpush1.msra.mxu0 0.0
    %1522 = vmatprep.subr.mxu0 0.0
    %1523 = vmatpush1.msra.mxu0 0.0
    %1524 = vmatprep.subr.mxu0 0.0
    %1525 = vmatpush1.msra.mxu0 0.0
    %1526 = vmatprep.subr.mxu0 0.0
    %1527 = vmatpush1.msra.mxu0 0.0
    %1528 = vmatprep.subr.mxu0 0.0
    %1529 = vmatpush1.msra.mxu0 %v1497
    %1530 = vmatprep.subr.mxu0 0.0
    %1531 = vmatpush1.msra.mxu0 %v1496
    %1532 = vmatprep.subr.mxu0 0.0
    %1533 = vmatpush1.msra.mxu0 %v1495
    %1534 = vmatprep.subr.mxu0 0.0
    %1535 = vmatpush1.msra.mxu0 %v1494
    %1536 = vmatprep.subr.mxu0 0.0
    %1537 = vmatpush1.msra.mxu0 %v1493
    %1538 = vmatprep.subr.mxu0 0.0
    %1539 = vmatpush1.msra.mxu0 %v1492
    %1540 = vmatprep.subr.mxu0 0.0
    %1541 = vmatpush2.msra.mxu0 0.0
    %1542 = vmatprep.subr.mxu0 0.0
    %1543 = vmatpush2.msra.mxu0 0.0
    %1544 = vmatprep.subr.mxu0 0.0
    %1545 = vmatpush2.msra.mxu0 0.0
    %1546 = vmatprep.subr.mxu0 0.0
    %1547 = vmatpush2.msra.mxu0 0.0
    %1548 = vmatprep.subr.mxu0 0.0
    %1549 = vmatpush2.msra.mxu0 0.0
    %1550 = vmatprep.subr.mxu0 0.0
    %1551 = vmatpush2.msra.mxu0 0.0
    %1552 = vmatprep.subr.mxu0 0.0
    %1553 = vmatpush2.msra.mxu0 0.0
    %1554 = vmatprep.subr.mxu0 0.0
    %1555 = vmatpush2.msra.mxu0 0.0
    %1556 = vmatprep.subr.mxu0 0.0
    %1557 = vmatpush2.msra.mxu0 0.0
    %1558 = vmatprep.subr.mxu0 0.0
    %1559 = vmatpush2.msra.mxu0 0.0
    %1560 = vmatprep.subr.mxu0 0.0
    %1561 = vmatpush2.msra.mxu0 0.0
    %1562 = vmatprep.subr.mxu0 0.0
    %1563 = vmatpush2.msra.mxu0 0.0
    %1564 = vmatprep.subr.mxu0 0.0
    %1565 = vmatpush2.msra.mxu0 0.0
    %1566 = vmatprep.subr.mxu0 0.0
    %1567 = vmatpush2.msra.mxu0 0.0
    %1568 = vmatprep.subr.mxu0 0.0
    %1569 = vmatpush2.msra.mxu0 0.0
    %1570 = vmatprep.subr.mxu0 0.0
    %1571 = vmatpush2.msra.mxu0 0.0
    %1572 = vmatprep.mubr.f32.mxu0 0.0
    %1573 = vmatmul.mubr.f32.gmra.mxu0 %v1503
    %v1574 = vpop.f32.mrf.mxu0
    %v1575 = vadd.f32 %v1501, %v1574
    %v1576 = vpop.f32.mrf.mxu0
    %1577 = vmatprep.mubr.f32.mxu0 0.0
    %1578 = vmatmul.mubr.f32.gmra.mxu0 %v1506
    %v1579 = vpop.f32.mrf.mxu0
    %v1580 = vadd.f32 %v1501, %v1579
    %v1581 = vpop.f32.mrf.mxu0
    %1582 = vdwg.mxu0
    %v1583 = vadd.f32 %v101, %v1575
    %v1584 = vadd.f32 %v102, %v1580
    %v1585 = vsel %vm127, %v1583, 0.0
    %1586 = vadd.xlane.f32.xlu0 %v1585
    %v1587 = vpop.xlane.xlu0 %1586
    %v1588 = vsel %vm127, %v1584, 0.0
    %1589 = vadd.xlane.f32.xlu0 %v1588
    %v1590 = vpop.xlane.xlu0 %1589
    %v1591 = vrcp.pop 48.0
    %v1592 = vmul.f32 %v1587, %v1591
    %v1593 = vmul.f32 %v1590, %v1591
    %v1594 = vsub.f32 %v1583, %v1592
    %v1595 = vsub.f32 %v1584, %v1593
    %v1596 = vmul.f32 %v1594, %v1594
    %v1597 = vmul.f32 %v1595, %v1595
    %v1598 = vsel %vm127, %v1596, 0.0
    %1599 = vadd.xlane.f32.xlu0 %v1598
    %v1600 = vpop.xlane.xlu0 %1599
    %v1601 = vsel %vm127, %v1597, 0.0
    %1602 = vadd.xlane.f32.xlu0 %v1601
    %v1603 = vpop.xlane.xlu0 %1602
    %v1604 = vmul.f32 %v1600, %v1591
    %v1605 = vmul.f32 %v1603, %v1591
    %v1606 = vadd.f32 %v1604, 1e-05
    %v1607 = vadd.f32 %v1605, 1e-05
    %v1608 = vrsqrt.pop %v1606
    %v1609 = vrsqrt.pop %v1607
    %v1610 = vmul.f32 %v1594, %v1608
    %v1611 = vmul.f32 %v1595, %v1609
    %v1612 = vlaneseq
    %v1613 = vshrl.u32 %v1612, 7
    %v1614 = vsub.s32 0, %v1613
    %v1615 = vrot.slane %v1487, %v1614
    %v1616 = vmul.f32 %v1610, %v1615
    %v1617 = vmul.f32 %v1611, %v1615
    %v1618 = vlaneseq
    %v1619 = vshrl.u32 %v1618, 7
    %v1620 = vsub.s32 0, %v1619
    %v1621 = vrot.slane %v1488, %v1620
    %v1622 = vadd.f32 %v1616, %v1621
    %v1623 = vadd.f32 %v1617, %v1621
    %v1624 = vld [vmem:[#allocation10] sm:$0xff]
    %v1625 = vld [vmem:[#allocation10 + $0x8] sm:$0xff]
    %v1626 = vld [vmem:[#allocation10 + $0x10] sm:$0xff]
    %v1627 = vld [vmem:[#allocation10 + $0x18] sm:$0xff]
    %v1628 = vld [vmem:[#allocation10 + $0x20] sm:$0xff]
    %v1629 = vld [vmem:[#allocation10 + $0x28] sm:$0xff]
    %v1631 = vsel %vm127, %v1622, 0
    %v1634 = vsel %vm127, %v1623, 0
    %1636 = vmatprep.subr.mxu0 0.0
    %1637 = vmatpush1.msra.mxu0 0.0
    %1638 = vmatprep.subr.mxu0 0.0
    %1639 = vmatpush1.msra.mxu0 0.0
    %1640 = vmatprep.subr.mxu0 0.0
    %1641 = vmatpush1.msra.mxu0 0.0
    %1642 = vmatprep.subr.mxu0 0.0
    %1643 = vmatpush1.msra.mxu0 0.0
    %1644 = vmatprep.subr.mxu0 0.0
    %1645 = vmatpush1.msra.mxu0 0.0
    %1646 = vmatprep.subr.mxu0 0.0
    %1647 = vmatpush1.msra.mxu0 0.0
    %1648 = vmatprep.subr.mxu0 0.0
    %1649 = vmatpush1.msra.mxu0 0.0
    %1650 = vmatprep.subr.mxu0 0.0
    %1651 = vmatpush1.msra.mxu0 0.0
    %1652 = vmatprep.subr.mxu0 0.0
    %1653 = vmatpush1.msra.mxu0 0.0
    %1654 = vmatprep.subr.mxu0 0.0
    %1655 = vmatpush1.msra.mxu0 0.0
    %1656 = vmatprep.subr.mxu0 0.0
    %1657 = vmatpush1.msra.mxu0 %v1629
    %1658 = vmatprep.subr.mxu0 0.0
    %1659 = vmatpush1.msra.mxu0 %v1628
    %1660 = vmatprep.subr.mxu0 0.0
    %1661 = vmatpush1.msra.mxu0 %v1627
    %1662 = vmatprep.subr.mxu0 0.0
    %1663 = vmatpush1.msra.mxu0 %v1626
    %1664 = vmatprep.subr.mxu0 0.0
    %1665 = vmatpush1.msra.mxu0 %v1625
    %1666 = vmatprep.subr.mxu0 0.0
    %1667 = vmatpush1.msra.mxu0 %v1624
    %1668 = vmatprep.subr.mxu0 0.0
    %1669 = vmatpush2.msra.mxu0 0.0
    %1670 = vmatprep.subr.mxu0 0.0
    %1671 = vmatpush2.msra.mxu0 0.0
    %1672 = vmatprep.subr.mxu0 0.0
    %1673 = vmatpush2.msra.mxu0 0.0
    %1674 = vmatprep.subr.mxu0 0.0
    %1675 = vmatpush2.msra.mxu0 0.0
    %1676 = vmatprep.subr.mxu0 0.0
    %1677 = vmatpush2.msra.mxu0 0.0
    %1678 = vmatprep.subr.mxu0 0.0
    %1679 = vmatpush2.msra.mxu0 0.0
    %1680 = vmatprep.subr.mxu0 0.0
    %1681 = vmatpush2.msra.mxu0 0.0
    %1682 = vmatprep.subr.mxu0 0.0
    %1683 = vmatpush2.msra.mxu0 0.0
    %1684 = vmatprep.subr.mxu0 0.0
    %1685 = vmatpush2.msra.mxu0 0.0
    %1686 = vmatprep.subr.mxu0 0.0
    %1687 = vmatpush2.msra.mxu0 0.0
    %1688 = vmatprep.subr.mxu0 0.0
    %1689 = vmatpush2.msra.mxu0 0.0
    %1690 = vmatprep.subr.mxu0 0.0
    %1691 = vmatpush2.msra.mxu0 0.0
    %1692 = vmatprep.subr.mxu0 0.0
    %1693 = vmatpush2.msra.mxu0 0.0
    %1694 = vmatprep.subr.mxu0 0.0
    %1695 = vmatpush2.msra.mxu0 0.0
    %1696 = vmatprep.subr.mxu0 0.0
    %1697 = vmatpush2.msra.mxu0 0.0
    %1698 = vmatprep.subr.mxu0 0.0
    %1699 = vmatpush2.msra.mxu0 0.0
    %1700 = vmatprep.mubr.f32.mxu0 0.0
    %1701 = vmatmul.mubr.f32.gmra.mxu0 %v1631
    %v1702 = vpop.f32.mrf.mxu0
    %v1703 = vadd.f32 0.0, %v1702
    %v1704 = vpop.f32.mrf.mxu0
    %1705 = vmatprep.mubr.f32.mxu0 0.0
    %1706 = vmatmul.mubr.f32.gmra.mxu0 %v1634
    %v1707 = vpop.f32.mrf.mxu0
    %v1708 = vadd.f32 0.0, %v1707
    %v1709 = vpop.f32.mrf.mxu0
    %1710 = vdwg.mxu0
    %v1711 = vld [vmem:[%s3] sm:$0xff]
    %v1712 = vld [vmem:[%s3 + $0x8] sm:$0xff]
    %1714 = vset.pattern.permute.xlu0 0
    %1715 = vperm.xlu0 %1714, %v1711
    %v1716 = vpop.permute.xlu0 %1715
    %1719 = vset.pattern.permute.xlu0 0
    %1720 = vperm.xlu0 %1719, %v1712
    %v1721 = vpop.permute.xlu0 %1720
    %v1723 = vmul.f32 %v1716, %v1703
    %v1724 = vmul.f32 %v1721, %v1708
    %v1725 = vld [vmem:[#allocation5] sm:$0xff]
    %v1726 = vld [vmem:[#allocation5 + $0x8] sm:$0xff]
    %1729 = vrot.lane.b32.xlu0 %v1703, 80
    %v1730 = vpop.permute.xlu0 %1729
    %1731 = vrot.lane.b32.xlu0 %v1708, 80
    %v1732 = vpop.permute.xlu0 %1731
    %v1736 = vsel %vm307, %v1725, 0
    %v1739 = vsel %vm307, %v1726, 0
    %1741 = vmatprep.subr.mxu0 0.0
    %1742 = vmatpush1.msra.mxu0 0.0
    %1743 = vmatprep.subr.mxu0 0.0
    %1744 = vmatpush1.msra.mxu0 0.0
    %1745 = vmatprep.subr.mxu0 0.0
    %1746 = vmatpush1.msra.mxu0 0.0
    %1747 = vmatprep.subr.mxu0 0.0
    %1748 = vmatpush1.msra.mxu0 0.0
    %1749 = vmatprep.subr.mxu0 0.0
    %1750 = vmatpush1.msra.mxu0 0.0
    %1751 = vmatprep.subr.mxu0 0.0
    %1752 = vmatpush1.msra.mxu0 0.0
    %1753 = vmatprep.subr.mxu0 0.0
    %1754 = vmatpush1.msra.mxu0 0.0
    %1755 = vmatprep.subr.mxu0 0.0
    %1756 = vmatpush1.msra.mxu0 0.0
    %1757 = vmatprep.subr.mxu0 0.0
    %1758 = vmatpush1.msra.mxu0 0.0
    %1759 = vmatprep.subr.mxu0 0.0
    %1760 = vmatpush1.msra.mxu0 0.0
    %1761 = vmatprep.subr.mxu0 0.0
    %1762 = vmatpush1.msra.mxu0 0.0
    %1763 = vmatprep.subr.mxu0 0.0
    %1764 = vmatpush1.msra.mxu0 0.0
    %1765 = vmatprep.subr.mxu0 0.0
    %1766 = vmatpush1.msra.mxu0 0.0
    %1767 = vmatprep.subr.mxu0 0.0
    %1768 = vmatpush1.msra.mxu0 0.0
    %1769 = vmatprep.subr.mxu0 0.0
    %1770 = vmatpush1.msra.mxu0 %v1732
    %1771 = vmatprep.subr.mxu0 0.0
    %1772 = vmatpush1.msra.mxu0 %v1730
    %1773 = vmatprep.subr.mxu0 0.0
    %1774 = vmatpush2.msra.mxu0 0.0
    %1775 = vmatprep.subr.mxu0 0.0
    %1776 = vmatpush2.msra.mxu0 0.0
    %1777 = vmatprep.subr.mxu0 0.0
    %1778 = vmatpush2.msra.mxu0 0.0
    %1779 = vmatprep.subr.mxu0 0.0
    %1780 = vmatpush2.msra.mxu0 0.0
    %1781 = vmatprep.subr.mxu0 0.0
    %1782 = vmatpush2.msra.mxu0 0.0
    %1783 = vmatprep.subr.mxu0 0.0
    %1784 = vmatpush2.msra.mxu0 0.0
    %1785 = vmatprep.subr.mxu0 0.0
    %1786 = vmatpush2.msra.mxu0 0.0
    %1787 = vmatprep.subr.mxu0 0.0
    %1788 = vmatpush2.msra.mxu0 0.0
    %1789 = vmatprep.subr.mxu0 0.0
    %1790 = vmatpush2.msra.mxu0 0.0
    %1791 = vmatprep.subr.mxu0 0.0
    %1792 = vmatpush2.msra.mxu0 0.0
    %1793 = vmatprep.subr.mxu0 0.0
    %1794 = vmatpush2.msra.mxu0 0.0
    %1795 = vmatprep.subr.mxu0 0.0
    %1796 = vmatpush2.msra.mxu0 0.0
    %1797 = vmatprep.subr.mxu0 0.0
    %1798 = vmatpush2.msra.mxu0 0.0
    %1799 = vmatprep.subr.mxu0 0.0
    %1800 = vmatpush2.msra.mxu0 0.0
    %1801 = vmatprep.subr.mxu0 0.0
    %1802 = vmatpush2.msra.mxu0 0.0
    %1803 = vmatprep.subr.mxu0 0.0
    %1804 = vmatpush2.msra.mxu0 0.0
    %1805 = vmatprep.mubr.f32.mxu0 0.0
    %1806 = vmatmul.mubr.f32.gmra.mxu0 %v1736
    %v1807 = vpop.f32.mrf.mxu0
    %v1808 = vadd.f32 0.0, %v1807
    %v1809 = vpop.f32.mrf.mxu0
    %1810 = vmatprep.mubr.f32.mxu0 0.0
    %1811 = vmatmul.mubr.f32.gmra.mxu0 %v1739
    %v1812 = vpop.f32.mrf.mxu0
    %v1813 = vadd.f32 0.0, %v1812
    %v1814 = vpop.f32.mrf.mxu0
    %1815 = vdwg.mxu0
    %v1816 = vadd.f32 %v1723, %v1808
    %v1817 = vadd.f32 %v1724, %v1813
    %v1818 = vlaneseq
    %v1819 = vshrl.u32 %v1818, 7
    %v1820 = vsub.s32 0, %v1819
    %v1821 = vrot.slane %v1489, %v1820
    %v1822 = vadd.f32 %v1816, %v1821
    %v1823 = vadd.f32 %v1817, %v1821
    %v1824 = vadd.f32 %v1622, %v1822
    %v1825 = vadd.f32 %v1623, %v1823
    %v1826 = vsel %vm127, %v1824, 0.0
    %1827 = vadd.xlane.f32.xlu0 %v1826
    %v1828 = vpop.xlane.xlu0 %1827
    %v1829 = vsel %vm127, %v1825, 0.0
    %1830 = vadd.xlane.f32.xlu0 %v1829
    %v1831 = vpop.xlane.xlu0 %1830
    %v1832 = vmul.f32 %v1828, %v1591
    %v1833 = vmul.f32 %v1831, %v1591
    %v1834 = vsub.f32 %v1824, %v1832
    %v1835 = vsub.f32 %v1825, %v1833
    %v1836 = vmul.f32 %v1834, %v1834
    %v1837 = vmul.f32 %v1835, %v1835
    %v1838 = vsel %vm127, %v1836, 0.0
    %1839 = vadd.xlane.f32.xlu0 %v1838
    %v1840 = vpop.xlane.xlu0 %1839
    %v1841 = vsel %vm127, %v1837, 0.0
    %1842 = vadd.xlane.f32.xlu0 %v1841
    %v1843 = vpop.xlane.xlu0 %1842
    %v1844 = vmul.f32 %v1840, %v1591
    %v1845 = vmul.f32 %v1843, %v1591
    %v1846 = vadd.f32 %v1844, 1e-05
    %v1847 = vadd.f32 %v1845, 1e-05
    %v1848 = vrsqrt.pop %v1846
    %v1849 = vrsqrt.pop %v1847
    %v1850 = vmul.f32 %v1834, %v1848
    %v1851 = vmul.f32 %v1835, %v1849
    %v1852 = vlaneseq
    %v1853 = vshrl.u32 %v1852, 7
    %v1854 = vsub.s32 0, %v1853
    %v1855 = vrot.slane %v1490, %v1854
    %v1856 = vmul.f32 %v1850, %v1855
    %v1857 = vmul.f32 %v1851, %v1855
    %v1858 = vlaneseq
    %v1859 = vshrl.u32 %v1858, 7
    %v1860 = vsub.s32 0, %v1859
    %v1861 = vrot.slane %v1491, %v1860
    %v1862 = vadd.f32 %v1856, %v1861
    %v1863 = vadd.f32 %v1857, %v1861
    %1864 = vst.msk [vmem:[#allocation11] sm:$0xff] %vm127, %v1862
    %1865 = vst.msk [vmem:[#allocation11 + $0x8] sm:$0xff] %vm127, %v1863
    // Predicated region
    $region58: #{tpu_custom_call.1} parent=1 // pred_check
      _
    $region59: #{tpu_custom_call.1} parent=1 // pred_check_branch
      %1867 = sbr.rel (0) target = $region61
    $region60: #{tpu_custom_call.1} parent=1 // pred_region
      %s1869 = ssub.s32 256, 256
      %1870 = vsyncadd [#allocation4], %s1869
      %s1871 = sshll.u32 [#allocation11], 4
      %s1872 = int_to_ptr.vmem [resolvable:$true] %s1871
      %1877 = dma.vmem_to_hbm [thread:$0]  %s1872, 256, %s9, [#allocation4], 128, 128, 8
    $region61: #{tpu_custom_call.1} parent=1 // pred_fallthru
      _
    // Predicated region
    $region62: #{tpu_custom_call.1} parent=1 // pred_check
      _
    $region63: #{tpu_custom_call.1} parent=1 // pred_check_branch
      %1879 = sbr.rel (0) target = $region65
    $region64: #{tpu_custom_call.1} parent=1 // pred_region
      %1880 = dma.done [#allocation4], 256
    $region65: #{tpu_custom_call.1} parent=1 // pred_fallthru
      _
    %1881 = vsyncpa [#allocation3], 1
    %1882 = vsyncpa [#allocation6], 1
    %1883 = vsyncpa [#allocation9], 1
    %1884 = vsyncpa [#allocation4], 1

</llo_original>
